<compile_context>
chip_gen: v7x
topology: tpu7x:2x2x1
jax: 0.10.0
libtpu: 0.0.40
codegen_flags: <defaults>
</compile_context>

<pallas_src>
import functools

import jax
import jax.numpy as jnp
from jax import lax
from jax.experimental import pallas as pl
from jax.experimental.pallas import tpu as pltpu


# ----------------------------------------------------------------------------
# Fused MHA kernel: Bt batch elements per grid step, all heads in-kernel.
# ----------------------------------------------------------------------------
def _mha_fused_kernel(xq_ref, xkv_ref, wq_ref, wk_ref, wv_ref, wo_ref, bo_ref,
                      y_ref, *score_refs, num_heads, inv_temperature):
    """Shapes per grid step:
         xq:  (Bt, Nq,  num_q)  bf16      wq: (H, num_q,  chq) bf16
         xkv: (Bt, Nkv, num_kv) bf16      wk: (H, num_kv, chq) bf16
                                          wv: (H, num_kv, cv)  bf16
                                          wo: (H, cv, num_q)   bf16
         bo:  (1, num_q) f32
         y:   (Bt, Nq, num_q) f32         scores (optional): (Bt*H, Nq, Nkv)
    """
    s_ref = score_refs[0] if score_refs else None
    H = num_heads
    Bt, Nq, num_q = xq_ref.shape

    # Contract the channel axis of both operands directly — no k.T materialized.
    qk_dims = (((1,), (1,)), ((), ()))

    for bi in range(Bt):                      # static unroll over in-step batch rows
        xq = xq_ref[bi]                       # (Nq,  num_q)  bf16
        xkv = xkv_ref[bi]                     # (Nkv, num_kv) bf16

        # Single f32 accumulator for the output projection (no head concat).
        y_acc = jnp.zeros((Nq, num_q), jnp.float32)

        for h in range(H):                    # static unroll; head-major weights
            # Per-head q/k/v projections: bf16 MXU inputs, f32 accumulation.
            qh = jnp.dot(xq, wq_ref[h], preferred_element_type=jnp.float32)
            kh = jnp.dot(xkv, wk_ref[h], preferred_element_type=jnp.float32)
            vh = jnp.dot(xkv, wv_ref[h], preferred_element_type=jnp.float32)

            # Fold 1/temperature into q (Nq*chq elements, not Nq*Nkv scores).
            qh = qh * inv_temperature

            # QK^T on the MXU (bf16 operands, f32 accumulation).
            logits = lax.dot_general(
                qh.astype(jnp.bfloat16), kh.astype(jnp.bfloat16), qk_dims,
                preferred_element_type=jnp.float32)          # (Nq, Nkv)

            # Softmax in f32; EXACT normalization so the returned attention
            # scores sum to 1 (review correctness concern).
            m = jnp.max(logits, axis=-1, keepdims=True)
            e = jnp.exp(logits - m)
            p = e / jnp.sum(e, axis=-1, keepdims=True)       # (Nq, Nkv) f32

            if s_ref is not None:
                # '(b h) n c' layout: contiguous slab inside the step's block.
                s_ref[bi * H + h] = p.astype(s_ref.dtype)

            # TODO(synk): attention dropout not wired in (eval-mode identity).
            ctx = jnp.dot(p.astype(jnp.bfloat16), vh.astype(jnp.bfloat16),
                          preferred_element_type=jnp.float32)  # (Nq, cv)

            # Output projection folded into the head loop (accumulate in f32).
            y_acc = y_acc + jnp.dot(ctx.astype(jnp.bfloat16), wo_ref[h],
                                    preferred_element_type=jnp.float32)

        y_ref[bi] = (y_acc + bo_ref[...]).astype(y_ref.dtype)


# ----------------------------------------------------------------------------
# Pallas wrapper
# ----------------------------------------------------------------------------
def pallas_mha(x_q, x_kv, wq, wk, wv, wo, bo, *, num_heads, temperature,
               batch_block=None, return_scores=True, scores_dtype=jnp.float32):
    """x_q: (B, Nq, num_q), x_kv: (B, Nkv, num_kv).  Weights in PyTorch
    nn.Linear layout: wq (num_qk_proj, num_q), wk (num_qk_proj, num_kv),
    wv (num_v_proj, num_kv), wo (num_q, num_v_proj), bo (num_q,).
    Returns (y: (B, Nq, num_q) f32, scores: (B*H, Nq, Nkv) or None)."""
    B, Nq, num_q = x_q.shape
    _, Nkv, num_kv = x_kv.shape
    H = num_heads
    num_qk_proj = wq.shape[0]
    num_v_proj = wv.shape[0]
    chq = num_qk_proj // H
    cv = num_v_proj // H

    if batch_block is None:
        # Even grid of 2 steps fills both v7x TensorCores; odd batch -> 1 step.
        batch_block = B // 2 if (B % 2 == 0 and B >= 2) else B
    bt = batch_block
    assert B % bt == 0, "batch_block must divide the batch size"
    n_steps = B // bt

    # bf16 MXU inputs + head-major weight layouts (leading head axis -> no
    # sub-128-lane per-head slicing inside the kernel).
    cdt = jnp.bfloat16
    xq_b = x_q.astype(cdt)
    xkv_b = x_kv.astype(cdt)
    wq_h = wq.T.reshape(num_q, H, chq).transpose(1, 0, 2).astype(cdt)    # (H, num_q,  chq)
    wk_h = wk.T.reshape(num_kv, H, chq).transpose(1, 0, 2).astype(cdt)   # (H, num_kv, chq)
    wv_h = wv.T.reshape(num_kv, H, cv).transpose(1, 0, 2).astype(cdt)    # (H, num_kv, cv)
    wo_h = wo.T.reshape(H, cv, num_q).astype(cdt)                        # (H, cv, num_q)
    bo2 = bo.reshape(1, num_q).astype(jnp.float32)

    kernel = functools.partial(
        _mha_fused_kernel, num_heads=H, inv_temperature=1.0 / float(temperature))

    in_specs = [
        pl.BlockSpec((bt, Nq, num_q), lambda b: (b, 0, 0)),
        pl.BlockSpec((bt, Nkv, num_kv), lambda b: (b, 0, 0)),
        # Constant index_maps: weights are DMA'd once and stay VMEM-resident.
        pl.BlockSpec((H, num_q, chq), lambda b: (0, 0, 0)),
        pl.BlockSpec((H, num_kv, chq), lambda b: (0, 0, 0)),
        pl.BlockSpec((H, num_kv, cv), lambda b: (0, 0, 0)),
        pl.BlockSpec((H, cv, num_q), lambda b: (0, 0, 0)),
        pl.BlockSpec((1, num_q), lambda b: (0, 0)),
    ]
    y_shape = jax.ShapeDtypeStruct((B, Nq, num_q), jnp.float32)
    y_spec = pl.BlockSpec((bt, Nq, num_q), lambda b: (b, 0, 0))
    if return_scores:
        s_bytes = jnp.dtype(scores_dtype).itemsize
        out_shape = (y_shape,
                     jax.ShapeDtypeStruct((B * H, Nq, Nkv), scores_dtype))
        out_specs = (y_spec,
                     pl.BlockSpec((bt * H, Nq, Nkv), lambda b: (b, 0, 0)))
    else:
        s_bytes = 0
        out_shape = y_shape
        out_specs = y_spec

    # Cost estimate (advisory).
    flops = 2 * B * H * (
        Nq * num_q * chq + Nkv * num_kv * chq + Nkv * num_kv * cv
        + Nq * Nkv * chq + Nq * Nkv * cv + Nq * cv * num_q)
    bytes_accessed = (
        2 * (xq_b.size + xkv_b.size
             + wq_h.size + wk_h.size + wv_h.size + wo_h.size)
        + 4 * bo2.size + 4 * B * Nq * num_q + s_bytes * B * H * Nq * Nkv)

    # Explicit VMEM budget (v5e default scoped limit is only 16 MiB); capped at
    # 64 MiB so the same config stays portable to v7x.
    blk_bytes = (2 * (bt * Nq * num_q + bt * Nkv * num_kv)
                 + 2 * (wq_h.size + wk_h.size + wv_h.size + wo_h.size)
                 + 4 * bo2.size + 4 * bt * Nq * num_q
                 + s_bytes * bt * H * Nq * Nkv)
    vmem_limit = int(min(64 * 2**20, max(16 * 2**20, 8 * blk_bytes)))

    out = pl.pallas_call(
        kernel,
        out_shape=out_shape,
        grid_spec=pltpu.PrefetchScalarGridSpec(
            num_scalar_prefetch=0,
            grid=(n_steps,),
            in_specs=in_specs,
            out_specs=out_specs,
        ),
        compiler_params=pltpu.CompilerParams(
            # Batch-block axis shards across the 2 TensorCores on v7x.
            dimension_semantics=("parallel",),
            vmem_limit_bytes=vmem_limit,
        ),
        cost_estimate=pl.CostEstimate(
            flops=flops,
            transcendentals=B * H * Nq * Nkv,
            bytes_accessed=bytes_accessed,
        ),
    )(xq_b, xkv_b, wq_h, wk_h, wv_h, wo_h, bo2)

    if return_scores:
        return out  # (y, scores)
    return out, None


# ----------------------------------------------------------------------------
# MultiHeadAttention forward (thin glue; hot path is one fused Pallas kernel)
# ----------------------------------------------------------------------------
def multi_head_attention(params, x_q, x_kv, num_heads):
    wq, wk, wv, wo, bo = (
        params["q_proj"], params["k_proj"], params["v_proj"],
        params["o_proj_w"], params["o_proj_b"],
    )
    num_qk_proj = wq.shape[0]
    temperature = float((num_qk_proj // num_heads) ** 0.5)
    # Scores already come out in the module's '(b h) n c' layout.
    return pallas_mha(x_q, x_kv, wq, wk, wv, wo, bo,
                      num_heads=num_heads, temperature=temperature)


# ----------------------------------------------------------------------------
# Deterministic parameter init (PyTorch nn.Linear shapes: (out, in))
# ----------------------------------------------------------------------------
def init_params(key, num_q, num_kv, num_qk_proj, num_v_proj):
    ks = jax.random.split(key, 5)

    def uinit(k, shape, fan_in):
        bound = 1.0 / (fan_in ** 0.5)
        return jax.random.uniform(k, shape, jnp.float32, -bound, bound)

    return {
        "q_proj": uinit(ks[0], (num_qk_proj, num_q), num_q),
        "k_proj": uinit(ks[1], (num_qk_proj, num_kv), num_kv),
        "v_proj": uinit(ks[2], (num_v_proj, num_kv), num_kv),
        "o_proj_w": uinit(ks[3], (num_q, num_v_proj), num_v_proj),
        "o_proj_b": uinit(ks[4], (num_q,), num_v_proj),
    }


# ----------------------------------------------------------------------------
# Pure-JAX f32 reference for correctness check
# ----------------------------------------------------------------------------
def reference_mha(params, x_q, x_kv, num_heads):
    B, Nq, num_q = x_q.shape
    _, Nkv, _ = x_kv.shape
    wq, wk, wv, wo, bo = (
        params["q_proj"], params["k_proj"], params["v_proj"],
        params["o_proj_w"], params["o_proj_b"],
    )
    H = num_heads
    num_qk_proj, num_v_proj = wq.shape[0], wv.shape[0]
    temperature = (num_qk_proj // H) ** 0.5

    q = x_q @ wq.T
    k = x_kv @ wk.T
    v = x_kv @ wv.T

    def split(x, c):
        b, n, _ = x.shape
        return x.reshape(b, n, H, c).transpose(0, 2, 1, 3).reshape(b * H, n, c)

    qh = split(q, num_qk_proj // H)
    kh = split(k, num_qk_proj // H)
    vh = split(v, num_v_proj // H)
    att = jnp.einsum("bic,bjc->bij", qh, kh) / temperature
    scores = jax.nn.softmax(att, axis=-1)
    out = jnp.einsum("bij,bjc->bic", scores, vh)
    out = out.reshape(B, H, Nq, num_v_proj // H).transpose(0, 2, 1, 3)
    out = out.reshape(B, Nq, num_v_proj)
    return out @ wo.T + bo, scores


# ----------------------------------------------------------------------------
if __name__ == "__main__":
    # Small shapes consistent with the module's forward.
    num_heads = 4
    num_q = 32        # query feature dim
    num_kv = 24       # key/value feature dim
    num_qk_proj = 32  # chq = 8 per head
    num_v_proj = 16   # cv  = 4 per head
    B, Nq, Nkv = 2, 8, 10

    key = jax.random.PRNGKey(0)
    k_p, k_xq, k_xkv = jax.random.split(key, 3)
    params = init_params(k_p, num_q, num_kv, num_qk_proj, num_v_proj)
    x_q = jax.random.normal(k_xq, (B, Nq, num_q), jnp.float32)
    x_kv = jax.random.normal(k_xkv, (B, Nkv, num_kv), jnp.float32)

    mha = jax.jit(functools.partial(multi_head_attention, num_heads=num_heads))
    y, scores = mha(params, x_q, x_kv)
    y = jax.block_until_ready(y)
    scores = jax.block_until_ready(scores)

    y_ref, scores_ref = reference_mha(params, x_q, x_kv, num_heads)

    assert y.shape == (B, Nq, num_q)
    assert scores.shape == (B * num_heads, Nq, Nkv)
    # Tolerance accounts for bf16 MXU operands (reference is pure f32).
    assert jnp.allclose(y, y_ref, atol=2e-2, rtol=2e-2), \
        float(jnp.max(jnp.abs(y - y_ref)))
    assert jnp.allclose(scores, scores_ref, atol=2e-2, rtol=2e-2), \
        float(jnp.max(jnp.abs(scores - scores_ref)))

    print("KERNEL_OK")
</pallas_src>

<mosaic_0001>
module attributes {stable_mosaic.version = 11 : i64} {
  func.func @_mha_fused_kernel(%arg0: i32, %arg1: memref<1x8x32xbf16, #tpu.memory_space<vmem>>, %arg2: memref<1x10x24xbf16, #tpu.memory_space<vmem>>, %arg3: memref<4x32x8xbf16, #tpu.memory_space<vmem>>, %arg4: memref<4x24x8xbf16, #tpu.memory_space<vmem>>, %arg5: memref<4x24x4xbf16, #tpu.memory_space<vmem>>, %arg6: memref<4x4x32xbf16, #tpu.memory_space<vmem>>, %arg7: memref<1x32xf32, #tpu.memory_space<vmem>>, %arg8: memref<1x8x32xf32, #tpu.memory_space<vmem>>, %arg9: memref<4x8x10xf32, #tpu.memory_space<vmem>>) attributes {dimension_semantics = [#tpu.dimension_semantics<parallel>], iteration_bounds = array<i64: 2>, scalar_prefetch = 0 : i64, scratch_operands = 0 : i64, tpu.core_type = #tpu.core_type<tc>, window_params = [{transform_indices = @transform_0, window_bounds = array<i64: 1, 8, 32>}, {transform_indices = @transform_1, window_bounds = array<i64: 1, 10, 24>}, {pipeline_mode = #tpu.pipeline_mode<synchronous>, transform_indices = @transform_2, window_bounds = array<i64: 4, 32, 8>}, {pipeline_mode = #tpu.pipeline_mode<synchronous>, transform_indices = @transform_3, window_bounds = array<i64: 4, 24, 8>}, {pipeline_mode = #tpu.pipeline_mode<synchronous>, transform_indices = @transform_4, window_bounds = array<i64: 4, 24, 4>}, {pipeline_mode = #tpu.pipeline_mode<synchronous>, transform_indices = @transform_5, window_bounds = array<i64: 4, 4, 32>}, {pipeline_mode = #tpu.pipeline_mode<synchronous>, transform_indices = @transform_6, window_bounds = array<i64: 1, 32>}, {transform_indices = @transform_7, window_bounds = array<i64: 1, 8, 32>}, {transform_indices = @transform_8, window_bounds = array<i64: 4, 8, 10>}]} {
    %c0 = arith.constant 0 : index
    %c0_0 = arith.constant 0 : index
    %c0_1 = arith.constant 0 : index
    %0 = vector.load %arg1[%c0, %c0_0, %c0_1] : memref<1x8x32xbf16, #tpu.memory_space<vmem>>, vector<1x8x32xbf16>
    %1 = vector.shape_cast %0 : vector<1x8x32xbf16> to vector<8x32xbf16>
    %c0_2 = arith.constant 0 : index
    %c0_3 = arith.constant 0 : index
    %c0_4 = arith.constant 0 : index
    %2 = vector.load %arg2[%c0_2, %c0_3, %c0_4] : memref<1x10x24xbf16, #tpu.memory_space<vmem>>, vector<1x10x24xbf16>
    %3 = vector.shape_cast %2 : vector<1x10x24xbf16> to vector<10x24xbf16>
    %cst = arith.constant 0.000000e+00 : f32
    %4 = vector.broadcast %cst : f32 to vector<8x32xf32>
    %c0_5 = arith.constant 0 : index
    %c0_6 = arith.constant 0 : index
    %c0_7 = arith.constant 0 : index
    %5 = vector.load %arg3[%c0_5, %c0_6, %c0_7] : memref<4x32x8xbf16, #tpu.memory_space<vmem>>, vector<1x32x8xbf16>
    %6 = vector.shape_cast %5 : vector<1x32x8xbf16> to vector<32x8xbf16>
    %cst_8 = arith.constant dense<0.000000e+00> : vector<8x8xf32>
    %7 = tpu.matmul %1, %6, %cst_8 {dimension_numbers = #tpu.dot_dimension_numbers<[1], [0], [0], [1], [0, 0, 1, 1], [], []>} : vector<8x32xbf16>, vector<32x8xbf16>, vector<8x8xf32> -> vector<8x8xf32>
    %c0_9 = arith.constant 0 : index
    %c0_10 = arith.constant 0 : index
    %c0_11 = arith.constant 0 : index
    %8 = vector.load %arg4[%c0_9, %c0_10, %c0_11] : memref<4x24x8xbf16, #tpu.memory_space<vmem>>, vector<1x24x8xbf16>
    %9 = vector.shape_cast %8 : vector<1x24x8xbf16> to vector<24x8xbf16>
    %cst_12 = arith.constant dense<0.000000e+00> : vector<10x8xf32>
    %10 = tpu.matmul %3, %9, %cst_12 {dimension_numbers = #tpu.dot_dimension_numbers<[1], [0], [0], [1], [0, 0, 1, 1], [], []>} : vector<10x24xbf16>, vector<24x8xbf16>, vector<10x8xf32> -> vector<10x8xf32>
    %c0_13 = arith.constant 0 : index
    %c0_14 = arith.constant 0 : index
    %c0_15 = arith.constant 0 : index
    %11 = vector.load %arg5[%c0_13, %c0_14, %c0_15] : memref<4x24x4xbf16, #tpu.memory_space<vmem>>, vector<1x24x4xbf16>
    %12 = vector.shape_cast %11 : vector<1x24x4xbf16> to vector<24x4xbf16>
    %cst_16 = arith.constant dense<0.000000e+00> : vector<10x4xf32>
    %13 = tpu.matmul %3, %12, %cst_16 {dimension_numbers = #tpu.dot_dimension_numbers<[1], [0], [0], [1], [0, 0, 1, 1], [], []>} : vector<10x24xbf16>, vector<24x4xbf16>, vector<10x4xf32> -> vector<10x4xf32>
    %cst_17 = arith.constant 0.353553385 : f32
    %14 = vector.broadcast %cst_17 : f32 to vector<8x8xf32>
    %15 = arith.mulf %7, %14 : vector<8x8xf32>
    %16 = arith.truncf %15 : vector<8x8xf32> to vector<8x8xbf16>
    %17 = arith.truncf %10 : vector<10x8xf32> to vector<10x8xbf16>
    %cst_18 = arith.constant dense<0.000000e+00> : vector<8x10xf32>
    %18 = tpu.matmul %16, %17, %cst_18 {dimension_numbers = #tpu.dot_dimension_numbers<[1], [1], [0], [0], [0, 0, 1, 0], [], []>} : vector<8x8xbf16>, vector<10x8xbf16>, vector<8x10xf32> -> vector<8x10xf32>
    %cst_19 = arith.constant dense<0xFF800000> : vector<8xf32>
    %19 = vector.multi_reduction <maximumf>, %18, %cst_19 [1] : vector<8x10xf32> to vector<8xf32>
    %20 = vector.shape_cast %19 : vector<8xf32> to vector<8x1xf32>
    %21 = vector.broadcast %20 : vector<8x1xf32> to vector<8x10xf32>
    %22 = arith.subf %18, %21 : vector<8x10xf32>
    %23 = math.exp %22 : vector<8x10xf32>
    %cst_20 = arith.constant dense<0.000000e+00> : vector<8xf32>
    %24 = vector.multi_reduction <add>, %23, %cst_20 [1] : vector<8x10xf32> to vector<8xf32>
    %25 = vector.shape_cast %24 : vector<8xf32> to vector<8x1xf32>
    %26 = vector.broadcast %25 : vector<8x1xf32> to vector<8x10xf32>
    %27 = arith.divf %23, %26 : vector<8x10xf32>
    %c0_21 = arith.constant 0 : index
    %c0_22 = arith.constant 0 : index
    %c0_23 = arith.constant 0 : index
    %28 = vector.load %arg9[%c0_21, %c0_22, %c0_23] : memref<4x8x10xf32, #tpu.memory_space<vmem>>, vector<1x8x10xf32>
    %29 = vector.shape_cast %28 : vector<1x8x10xf32> to vector<8x10xf32>
    %30 = vector.shape_cast %27 : vector<8x10xf32> to vector<1x8x10xf32>
    tpu.vector_store %arg9[%c0_21, %c0_22, %c0_23], %30 {strides = array<i32>} : memref<4x8x10xf32, #tpu.memory_space<vmem>>, vector<1x8x10xf32>,
    %31 = arith.truncf %27 : vector<8x10xf32> to vector<8x10xbf16>
    %32 = arith.truncf %13 : vector<10x4xf32> to vector<10x4xbf16>
    %cst_24 = arith.constant dense<0.000000e+00> : vector<8x4xf32>
    %33 = tpu.matmul %31, %32, %cst_24 {dimension_numbers = #tpu.dot_dimension_numbers<[1], [0], [0], [1], [0, 0, 1, 1], [], []>} : vector<8x10xbf16>, vector<10x4xbf16>, vector<8x4xf32> -> vector<8x4xf32>
    %34 = arith.truncf %33 : vector<8x4xf32> to vector<8x4xbf16>
    %c0_25 = arith.constant 0 : index
    %c0_26 = arith.constant 0 : index
    %c0_27 = arith.constant 0 : index
    %35 = vector.load %arg6[%c0_25, %c0_26, %c0_27] : memref<4x4x32xbf16, #tpu.memory_space<vmem>>, vector<1x4x32xbf16>
    %36 = vector.shape_cast %35 : vector<1x4x32xbf16> to vector<4x32xbf16>
    %cst_28 = arith.constant dense<0.000000e+00> : vector<8x32xf32>
    %37 = tpu.matmul %34, %36, %cst_28 {dimension_numbers = #tpu.dot_dimension_numbers<[1], [0], [0], [1], [0, 0, 1, 1], [], []>} : vector<8x4xbf16>, vector<4x32xbf16>, vector<8x32xf32> -> vector<8x32xf32>
    %38 = arith.addf %4, %37 : vector<8x32xf32>
    %c1 = arith.constant 1 : index
    %c0_29 = arith.constant 0 : index
    %c0_30 = arith.constant 0 : index
    %39 = vector.load %arg3[%c1, %c0_29, %c0_30] : memref<4x32x8xbf16, #tpu.memory_space<vmem>>, vector<1x32x8xbf16>
    %40 = vector.shape_cast %39 : vector<1x32x8xbf16> to vector<32x8xbf16>
    %cst_31 = arith.constant dense<0.000000e+00> : vector<8x8xf32>
    %41 = tpu.matmul %1, %40, %cst_31 {dimension_numbers = #tpu.dot_dimension_numbers<[1], [0], [0], [1], [0, 0, 1, 1], [], []>} : vector<8x32xbf16>, vector<32x8xbf16>, vector<8x8xf32> -> vector<8x8xf32>
    %c1_32 = arith.constant 1 : index
    %c0_33 = arith.constant 0 : index
    %c0_34 = arith.constant 0 : index
    %42 = vector.load %arg4[%c1_32, %c0_33, %c0_34] : memref<4x24x8xbf16, #tpu.memory_space<vmem>>, vector<1x24x8xbf16>
    %43 = vector.shape_cast %42 : vector<1x24x8xbf16> to vector<24x8xbf16>
    %cst_35 = arith.constant dense<0.000000e+00> : vector<10x8xf32>
    %44 = tpu.matmul %3, %43, %cst_35 {dimension_numbers = #tpu.dot_dimension_numbers<[1], [0], [0], [1], [0, 0, 1, 1], [], []>} : vector<10x24xbf16>, vector<24x8xbf16>, vector<10x8xf32> -> vector<10x8xf32>
    %c1_36 = arith.constant 1 : index
    %c0_37 = arith.constant 0 : index
    %c0_38 = arith.constant 0 : index
    %45 = vector.load %arg5[%c1_36, %c0_37, %c0_38] : memref<4x24x4xbf16, #tpu.memory_space<vmem>>, vector<1x24x4xbf16>
    %46 = vector.shape_cast %45 : vector<1x24x4xbf16> to vector<24x4xbf16>
    %cst_39 = arith.constant dense<0.000000e+00> : vector<10x4xf32>
    %47 = tpu.matmul %3, %46, %cst_39 {dimension_numbers = #tpu.dot_dimension_numbers<[1], [0], [0], [1], [0, 0, 1, 1], [], []>} : vector<10x24xbf16>, vector<24x4xbf16>, vector<10x4xf32> -> vector<10x4xf32>
    %cst_40 = arith.constant 0.353553385 : f32
    %48 = vector.broadcast %cst_40 : f32 to vector<8x8xf32>
    %49 = arith.mulf %41, %48 : vector<8x8xf32>
    %50 = arith.truncf %49 : vector<8x8xf32> to vector<8x8xbf16>
    %51 = arith.truncf %44 : vector<10x8xf32> to vector<10x8xbf16>
    %cst_41 = arith.constant dense<0.000000e+00> : vector<8x10xf32>
    %52 = tpu.matmul %50, %51, %cst_41 {dimension_numbers = #tpu.dot_dimension_numbers<[1], [1], [0], [0], [0, 0, 1, 0], [], []>} : vector<8x8xbf16>, vector<10x8xbf16>, vector<8x10xf32> -> vector<8x10xf32>
    %cst_42 = arith.constant dense<0xFF800000> : vector<8xf32>
    %53 = vector.multi_reduction <maximumf>, %52, %cst_42 [1] : vector<8x10xf32> to vector<8xf32>
    %54 = vector.shape_cast %53 : vector<8xf32> to vector<8x1xf32>
    %55 = vector.broadcast %54 : vector<8x1xf32> to vector<8x10xf32>
    %56 = arith.subf %52, %55 : vector<8x10xf32>
    %57 = math.exp %56 : vector<8x10xf32>
    %cst_43 = arith.constant dense<0.000000e+00> : vector<8xf32>
    %58 = vector.multi_reduction <add>, %57, %cst_43 [1] : vector<8x10xf32> to vector<8xf32>
    %59 = vector.shape_cast %58 : vector<8xf32> to vector<8x1xf32>
    %60 = vector.broadcast %59 : vector<8x1xf32> to vector<8x10xf32>
    %61 = arith.divf %57, %60 : vector<8x10xf32>
    %c1_44 = arith.constant 1 : index
    %c0_45 = arith.constant 0 : index
    %c0_46 = arith.constant 0 : index
    %62 = vector.load %arg9[%c1_44, %c0_45, %c0_46] : memref<4x8x10xf32, #tpu.memory_space<vmem>>, vector<1x8x10xf32>
    %63 = vector.shape_cast %62 : vector<1x8x10xf32> to vector<8x10xf32>
    %64 = vector.shape_cast %61 : vector<8x10xf32> to vector<1x8x10xf32>
    tpu.vector_store %arg9[%c1_44, %c0_45, %c0_46], %64 {strides = array<i32>} : memref<4x8x10xf32, #tpu.memory_space<vmem>>, vector<1x8x10xf32>,
    %65 = arith.truncf %61 : vector<8x10xf32> to vector<8x10xbf16>
    %66 = arith.truncf %47 : vector<10x4xf32> to vector<10x4xbf16>
    %cst_47 = arith.constant dense<0.000000e+00> : vector<8x4xf32>
    %67 = tpu.matmul %65, %66, %cst_47 {dimension_numbers = #tpu.dot_dimension_numbers<[1], [0], [0], [1], [0, 0, 1, 1], [], []>} : vector<8x10xbf16>, vector<10x4xbf16>, vector<8x4xf32> -> vector<8x4xf32>
    %68 = arith.truncf %67 : vector<8x4xf32> to vector<8x4xbf16>
    %c1_48 = arith.constant 1 : index
    %c0_49 = arith.constant 0 : index
    %c0_50 = arith.constant 0 : index
    %69 = vector.load %arg6[%c1_48, %c0_49, %c0_50] : memref<4x4x32xbf16, #tpu.memory_space<vmem>>, vector<1x4x32xbf16>
    %70 = vector.shape_cast %69 : vector<1x4x32xbf16> to vector<4x32xbf16>
    %cst_51 = arith.constant dense<0.000000e+00> : vector<8x32xf32>
    %71 = tpu.matmul %68, %70, %cst_51 {dimension_numbers = #tpu.dot_dimension_numbers<[1], [0], [0], [1], [0, 0, 1, 1], [], []>} : vector<8x4xbf16>, vector<4x32xbf16>, vector<8x32xf32> -> vector<8x32xf32>
    %72 = arith.addf %38, %71 : vector<8x32xf32>
    %c2 = arith.constant 2 : index
    %c0_52 = arith.constant 0 : index
    %c0_53 = arith.constant 0 : index
    %73 = vector.load %arg3[%c2, %c0_52, %c0_53] : memref<4x32x8xbf16, #tpu.memory_space<vmem>>, vector<1x32x8xbf16>
    %74 = vector.shape_cast %73 : vector<1x32x8xbf16> to vector<32x8xbf16>
    %cst_54 = arith.constant dense<0.000000e+00> : vector<8x8xf32>
    %75 = tpu.matmul %1, %74, %cst_54 {dimension_numbers = #tpu.dot_dimension_numbers<[1], [0], [0], [1], [0, 0, 1, 1], [], []>} : vector<8x32xbf16>, vector<32x8xbf16>, vector<8x8xf32> -> vector<8x8xf32>
    %c2_55 = arith.constant 2 : index
    %c0_56 = arith.constant 0 : index
    %c0_57 = arith.constant 0 : index
    %76 = vector.load %arg4[%c2_55, %c0_56, %c0_57] : memref<4x24x8xbf16, #tpu.memory_space<vmem>>, vector<1x24x8xbf16>
    %77 = vector.shape_cast %76 : vector<1x24x8xbf16> to vector<24x8xbf16>
    %cst_58 = arith.constant dense<0.000000e+00> : vector<10x8xf32>
    %78 = tpu.matmul %3, %77, %cst_58 {dimension_numbers = #tpu.dot_dimension_numbers<[1], [0], [0], [1], [0, 0, 1, 1], [], []>} : vector<10x24xbf16>, vector<24x8xbf16>, vector<10x8xf32> -> vector<10x8xf32>
    %c2_59 = arith.constant 2 : index
    %c0_60 = arith.constant 0 : index
    %c0_61 = arith.constant 0 : index
    %79 = vector.load %arg5[%c2_59, %c0_60, %c0_61] : memref<4x24x4xbf16, #tpu.memory_space<vmem>>, vector<1x24x4xbf16>
    %80 = vector.shape_cast %79 : vector<1x24x4xbf16> to vector<24x4xbf16>
    %cst_62 = arith.constant dense<0.000000e+00> : vector<10x4xf32>
    %81 = tpu.matmul %3, %80, %cst_62 {dimension_numbers = #tpu.dot_dimension_numbers<[1], [0], [0], [1], [0, 0, 1, 1], [], []>} : vector<10x24xbf16>, vector<24x4xbf16>, vector<10x4xf32> -> vector<10x4xf32>
    %cst_63 = arith.constant 0.353553385 : f32
    %82 = vector.broadcast %cst_63 : f32 to vector<8x8xf32>
    %83 = arith.mulf %75, %82 : vector<8x8xf32>
    %84 = arith.truncf %83 : vector<8x8xf32> to vector<8x8xbf16>
    %85 = arith.truncf %78 : vector<10x8xf32> to vector<10x8xbf16>
    %cst_64 = arith.constant dense<0.000000e+00> : vector<8x10xf32>
    %86 = tpu.matmul %84, %85, %cst_64 {dimension_numbers = #tpu.dot_dimension_numbers<[1], [1], [0], [0], [0, 0, 1, 0], [], []>} : vector<8x8xbf16>, vector<10x8xbf16>, vector<8x10xf32> -> vector<8x10xf32>
    %cst_65 = arith.constant dense<0xFF800000> : vector<8xf32>
    %87 = vector.multi_reduction <maximumf>, %86, %cst_65 [1] : vector<8x10xf32> to vector<8xf32>
    %88 = vector.shape_cast %87 : vector<8xf32> to vector<8x1xf32>
    %89 = vector.broadcast %88 : vector<8x1xf32> to vector<8x10xf32>
    %90 = arith.subf %86, %89 : vector<8x10xf32>
    %91 = math.exp %90 : vector<8x10xf32>
    %cst_66 = arith.constant dense<0.000000e+00> : vector<8xf32>
    %92 = vector.multi_reduction <add>, %91, %cst_66 [1] : vector<8x10xf32> to vector<8xf32>
    %93 = vector.shape_cast %92 : vector<8xf32> to vector<8x1xf32>
    %94 = vector.broadcast %93 : vector<8x1xf32> to vector<8x10xf32>
    %95 = arith.divf %91, %94 : vector<8x10xf32>
    %c2_67 = arith.constant 2 : index
    %c0_68 = arith.constant 0 : index
    %c0_69 = arith.constant 0 : index
    %96 = vector.load %arg9[%c2_67, %c0_68, %c0_69] : memref<4x8x10xf32, #tpu.memory_space<vmem>>, vector<1x8x10xf32>
    %97 = vector.shape_cast %96 : vector<1x8x10xf32> to vector<8x10xf32>
    %98 = vector.shape_cast %95 : vector<8x10xf32> to vector<1x8x10xf32>
    tpu.vector_store %arg9[%c2_67, %c0_68, %c0_69], %98 {strides = array<i32>} : memref<4x8x10xf32, #tpu.memory_space<vmem>>, vector<1x8x10xf32>,
    %99 = arith.truncf %95 : vector<8x10xf32> to vector<8x10xbf16>
    %100 = arith.truncf %81 : vector<10x4xf32> to vector<10x4xbf16>
    %cst_70 = arith.constant dense<0.000000e+00> : vector<8x4xf32>
    %101 = tpu.matmul %99, %100, %cst_70 {dimension_numbers = #tpu.dot_dimension_numbers<[1], [0], [0], [1], [0, 0, 1, 1], [], []>} : vector<8x10xbf16>, vector<10x4xbf16>, vector<8x4xf32> -> vector<8x4xf32>
    %102 = arith.truncf %101 : vector<8x4xf32> to vector<8x4xbf16>
    %c2_71 = arith.constant 2 : index
    %c0_72 = arith.constant 0 : index
    %c0_73 = arith.constant 0 : index
    %103 = vector.load %arg6[%c2_71, %c0_72, %c0_73] : memref<4x4x32xbf16, #tpu.memory_space<vmem>>, vector<1x4x32xbf16>
    %104 = vector.shape_cast %103 : vector<1x4x32xbf16> to vector<4x32xbf16>
    %cst_74 = arith.constant dense<0.000000e+00> : vector<8x32xf32>
    %105 = tpu.matmul %102, %104, %cst_74 {dimension_numbers = #tpu.dot_dimension_numbers<[1], [0], [0], [1], [0, 0, 1, 1], [], []>} : vector<8x4xbf16>, vector<4x32xbf16>, vector<8x32xf32> -> vector<8x32xf32>
    %106 = arith.addf %72, %105 : vector<8x32xf32>
    %c3 = arith.constant 3 : index
    %c0_75 = arith.constant 0 : index
    %c0_76 = arith.constant 0 : index
    %107 = vector.load %arg3[%c3, %c0_75, %c0_76] : memref<4x32x8xbf16, #tpu.memory_space<vmem>>, vector<1x32x8xbf16>
    %108 = vector.shape_cast %107 : vector<1x32x8xbf16> to vector<32x8xbf16>
    %cst_77 = arith.constant dense<0.000000e+00> : vector<8x8xf32>
    %109 = tpu.matmul %1, %108, %cst_77 {dimension_numbers = #tpu.dot_dimension_numbers<[1], [0], [0], [1], [0, 0, 1, 1], [], []>} : vector<8x32xbf16>, vector<32x8xbf16>, vector<8x8xf32> -> vector<8x8xf32>
    %c3_78 = arith.constant 3 : index
    %c0_79 = arith.constant 0 : index
    %c0_80 = arith.constant 0 : index
    %110 = vector.load %arg4[%c3_78, %c0_79, %c0_80] : memref<4x24x8xbf16, #tpu.memory_space<vmem>>, vector<1x24x8xbf16>
    %111 = vector.shape_cast %110 : vector<1x24x8xbf16> to vector<24x8xbf16>
    %cst_81 = arith.constant dense<0.000000e+00> : vector<10x8xf32>
    %112 = tpu.matmul %3, %111, %cst_81 {dimension_numbers = #tpu.dot_dimension_numbers<[1], [0], [0], [1], [0, 0, 1, 1], [], []>} : vector<10x24xbf16>, vector<24x8xbf16>, vector<10x8xf32> -> vector<10x8xf32>
    %c3_82 = arith.constant 3 : index
    %c0_83 = arith.constant 0 : index
    %c0_84 = arith.constant 0 : index
    %113 = vector.load %arg5[%c3_82, %c0_83, %c0_84] : memref<4x24x4xbf16, #tpu.memory_space<vmem>>, vector<1x24x4xbf16>
    %114 = vector.shape_cast %113 : vector<1x24x4xbf16> to vector<24x4xbf16>
    %cst_85 = arith.constant dense<0.000000e+00> : vector<10x4xf32>
    %115 = tpu.matmul %3, %114, %cst_85 {dimension_numbers = #tpu.dot_dimension_numbers<[1], [0], [0], [1], [0, 0, 1, 1], [], []>} : vector<10x24xbf16>, vector<24x4xbf16>, vector<10x4xf32> -> vector<10x4xf32>
    %cst_86 = arith.constant 0.353553385 : f32
    %116 = vector.broadcast %cst_86 : f32 to vector<8x8xf32>
    %117 = arith.mulf %109, %116 : vector<8x8xf32>
    %118 = arith.truncf %117 : vector<8x8xf32> to vector<8x8xbf16>
    %119 = arith.truncf %112 : vector<10x8xf32> to vector<10x8xbf16>
    %cst_87 = arith.constant dense<0.000000e+00> : vector<8x10xf32>
    %120 = tpu.matmul %118, %119, %cst_87 {dimension_numbers = #tpu.dot_dimension_numbers<[1], [1], [0], [0], [0, 0, 1, 0], [], []>} : vector<8x8xbf16>, vector<10x8xbf16>, vector<8x10xf32> -> vector<8x10xf32>
    %cst_88 = arith.constant dense<0xFF800000> : vector<8xf32>
    %121 = vector.multi_reduction <maximumf>, %120, %cst_88 [1] : vector<8x10xf32> to vector<8xf32>
    %122 = vector.shape_cast %121 : vector<8xf32> to vector<8x1xf32>
    %123 = vector.broadcast %122 : vector<8x1xf32> to vector<8x10xf32>
    %124 = arith.subf %120, %123 : vector<8x10xf32>
    %125 = math.exp %124 : vector<8x10xf32>
    %cst_89 = arith.constant dense<0.000000e+00> : vector<8xf32>
    %126 = vector.multi_reduction <add>, %125, %cst_89 [1] : vector<8x10xf32> to vector<8xf32>
    %127 = vector.shape_cast %126 : vector<8xf32> to vector<8x1xf32>
    %128 = vector.broadcast %127 : vector<8x1xf32> to vector<8x10xf32>
    %129 = arith.divf %125, %128 : vector<8x10xf32>
    %c3_90 = arith.constant 3 : index
    %c0_91 = arith.constant 0 : index
    %c0_92 = arith.constant 0 : index
    %130 = vector.load %arg9[%c3_90, %c0_91, %c0_92] : memref<4x8x10xf32, #tpu.memory_space<vmem>>, vector<1x8x10xf32>
    %131 = vector.shape_cast %130 : vector<1x8x10xf32> to vector<8x10xf32>
    %132 = vector.shape_cast %129 : vector<8x10xf32> to vector<1x8x10xf32>
    tpu.vector_store %arg9[%c3_90, %c0_91, %c0_92], %132 {strides = array<i32>} : memref<4x8x10xf32, #tpu.memory_space<vmem>>, vector<1x8x10xf32>,
    %133 = arith.truncf %129 : vector<8x10xf32> to vector<8x10xbf16>
    %134 = arith.truncf %115 : vector<10x4xf32> to vector<10x4xbf16>
    %cst_93 = arith.constant dense<0.000000e+00> : vector<8x4xf32>
    %135 = tpu.matmul %133, %134, %cst_93 {dimension_numbers = #tpu.dot_dimension_numbers<[1], [0], [0], [1], [0, 0, 1, 1], [], []>} : vector<8x10xbf16>, vector<10x4xbf16>, vector<8x4xf32> -> vector<8x4xf32>
    %136 = arith.truncf %135 : vector<8x4xf32> to vector<8x4xbf16>
    %c3_94 = arith.constant 3 : index
    %c0_95 = arith.constant 0 : index
    %c0_96 = arith.constant 0 : index
    %137 = vector.load %arg6[%c3_94, %c0_95, %c0_96] : memref<4x4x32xbf16, #tpu.memory_space<vmem>>, vector<1x4x32xbf16>
    %138 = vector.shape_cast %137 : vector<1x4x32xbf16> to vector<4x32xbf16>
    %cst_97 = arith.constant dense<0.000000e+00> : vector<8x32xf32>
    %139 = tpu.matmul %136, %138, %cst_97 {dimension_numbers = #tpu.dot_dimension_numbers<[1], [0], [0], [1], [0, 0, 1, 1], [], []>} : vector<8x4xbf16>, vector<4x32xbf16>, vector<8x32xf32> -> vector<8x32xf32>
    %140 = arith.addf %106, %139 : vector<8x32xf32>
    %c0_98 = arith.constant 0 : index
    %c0_99 = arith.constant 0 : index
    %141 = vector.load %arg7[%c0_98, %c0_99] : memref<1x32xf32, #tpu.memory_space<vmem>>, vector<1x32xf32>
    %142 = vector.broadcast %141 : vector<1x32xf32> to vector<8x32xf32>
    %143 = arith.addf %140, %142 : vector<8x32xf32>
    %c0_100 = arith.constant 0 : index
    %c0_101 = arith.constant 0 : index
    %c0_102 = arith.constant 0 : index
    %144 = vector.load %arg8[%c0_100, %c0_101, %c0_102] : memref<1x8x32xf32, #tpu.memory_space<vmem>>, vector<1x8x32xf32>
    %145 = vector.shape_cast %144 : vector<1x8x32xf32> to vector<8x32xf32>
    %146 = vector.shape_cast %143 : vector<8x32xf32> to vector<1x8x32xf32>
    tpu.vector_store %arg8[%c0_100, %c0_101, %c0_102], %146 {strides = array<i32>} : memref<1x8x32xf32, #tpu.memory_space<vmem>>, vector<1x8x32xf32>,
    return
  }
  func.func @transform_0(%arg0: i32) -> (i32, i32, i32) {
    %c0_i32 = arith.constant 0 : i32
    %c0_i32_0 = arith.constant 0 : i32
    %c0_i32_1 = arith.constant 0 : i32
    return %arg0, %c0_i32, %c0_i32_0 : i32, i32, i32
  }
  func.func @transform_1(%arg0: i32) -> (i32, i32, i32) {
    %c0_i32 = arith.constant 0 : i32
    %c0_i32_0 = arith.constant 0 : i32
    %c0_i32_1 = arith.constant 0 : i32
    return %arg0, %c0_i32, %c0_i32_0 : i32, i32, i32
  }
  func.func @transform_2(%arg0: i32) -> (i32, i32, i32) {
    %c0_i32 = arith.constant 0 : i32
    %c0_i32_0 = arith.constant 0 : i32
    %c0_i32_1 = arith.constant 0 : i32
    %c0_i32_2 = arith.constant 0 : i32
    return %c0_i32, %c0_i32_0, %c0_i32_1 : i32, i32, i32
  }
  func.func @transform_3(%arg0: i32) -> (i32, i32, i32) {
    %c0_i32 = arith.constant 0 : i32
    %c0_i32_0 = arith.constant 0 : i32
    %c0_i32_1 = arith.constant 0 : i32
    %c0_i32_2 = arith.constant 0 : i32
    return %c0_i32, %c0_i32_0, %c0_i32_1 : i32, i32, i32
  }
  func.func @transform_4(%arg0: i32) -> (i32, i32, i32) {
    %c0_i32 = arith.constant 0 : i32
    %c0_i32_0 = arith.constant 0 : i32
    %c0_i32_1 = arith.constant 0 : i32
    %c0_i32_2 = arith.constant 0 : i32
    return %c0_i32, %c0_i32_0, %c0_i32_1 : i32, i32, i32
  }
  func.func @transform_5(%arg0: i32) -> (i32, i32, i32) {
    %c0_i32 = arith.constant 0 : i32
    %c0_i32_0 = arith.constant 0 : i32
    %c0_i32_1 = arith.constant 0 : i32
    %c0_i32_2 = arith.constant 0 : i32
    return %c0_i32, %c0_i32_0, %c0_i32_1 : i32, i32, i32
  }
  func.func @transform_6(%arg0: i32) -> (i32, i32) {
    %c0_i32 = arith.constant 0 : i32
    %c0_i32_0 = arith.constant 0 : i32
    %c0_i32_1 = arith.constant 0 : i32
    return %c0_i32, %c0_i32_0 : i32, i32
  }
  func.func @transform_7(%arg0: i32) -> (i32, i32, i32) {
    %c0_i32 = arith.constant 0 : i32
    %c0_i32_0 = arith.constant 0 : i32
    %c0_i32_1 = arith.constant 0 : i32
    return %arg0, %c0_i32, %c0_i32_0 : i32, i32, i32
  }
  func.func @transform_8(%arg0: i32) -> (i32, i32, i32) {
    %c0_i32 = arith.constant 0 : i32
    %c0_i32_0 = arith.constant 0 : i32
    %c0_i32_1 = arith.constant 0 : i32
    return %arg0, %c0_i32, %c0_i32_0 : i32, i32, i32
  }
}

</mosaic_0001>

<llo_original>
// kernel: multi_head_attention.1
$region0: #{multi_head_attention.1}
  #allocation0 [shape = 'u32[]', space=smem, size = 0x4, offset = 0x4, fixed_abs, tag = 'smem constant byte address 0x4 - core index']
  #allocation1 [shape = 'u32[144,128]{1,0:T(1,128)}', space=vmem, size = 0x12000, scoped, tag = 'internal scratch']
  %s0 = inlined_call_operand.vmem [shape: bf16[2,8,32], index: 0, kind: input, shape index: {}]
  %s1 = inlined_call_operand.vmem [shape: bf16[2,10,24], index: 1, kind: input, shape index: {}]
  %s2 = inlined_call_operand.vmem [shape: bf16[4,32,8], index: 2, kind: input, shape index: {}]
  %s3 = inlined_call_operand.vmem [shape: bf16[4,24,8], index: 3, kind: input, shape index: {}]
  %s4 = inlined_call_operand.vmem [shape: bf16[4,24,4], index: 4, kind: input, shape index: {}]
  %s5 = inlined_call_operand.vmem [shape: bf16[4,4,32], index: 5, kind: input, shape index: {}]
  %s6 = inlined_call_operand.vmem [shape: f32[1,32], index: 6, kind: input, shape index: {}]
  %s7 = inlined_call_operand.hbm [shape: f32[2,8,32], index: 7, kind: output, shape index: {0}]
  %s8 = inlined_call_operand.hbm [shape: f32[8,8,10], index: 8, kind: output, shape index: {1}]
  %9 = xla_tuple %s7, %s8
  %s10 = sld [smem:[#allocation0]]
  $region69: #{multi_head_attention.1} parent=0
    _
  %s12 = ssub.s32 1, %s10
  %s13 = scalar_select 0, %s12, %s10
  $region1: #{multi_head_attention.1} parent=0
    #allocation2 [shape = 'u8[8192]{0}', space=vmem, size = 0x2000, scoped, tag = 'output window, operand 0']
    #allocation3 [shape = 's32[2]{0}', space=sflag, size = 0x8, scoped, tag = 'scoped memory for multi_head_attention.1']
    #allocation4 [shape = 'u8[32768]{0}', space=vmem, size = 0x8000, scoped, tag = 'output window, operand 1']
    #allocation5 [shape = 's32[2]{0}', space=sflag, size = 0x8, scoped, tag = 'scoped memory for multi_head_attention.1']
    %14 = vsyncpa [#allocation3], 0
    %s15 = scalar_lea.sflag [#allocation3], 1
    %16 = vsyncpa %s15, 0
    %17 = vsyncpa [#allocation5], 0
    %s18 = scalar_lea.sflag [#allocation5], 1
    %19 = vsyncpa %s18, 0
    loop: start=0, step=1, limit=4
    $region2: #{multi_head_attention.1} parent=1 // loop_pre_header
      _
    $region3: #{multi_head_attention.1} parent=1 // loop_header
      %s21 = sphi 0, %s25
      %p22 = scmp.ge.s32.totalorder %s21, 4
      %s31 = sphi 0, %s33
      %s34 = sphi 0, %s31
      %s35 = sphi 0, %s34
      %s51 = sphi 0, %s35
      %s57 = sphi 0, %s59
      %s60 = sphi 0, %s57
      %s61 = sphi 0, %s60
      %s77 = sphi 0, %s61
      %s81 = sphi 0, %s81
      %s83 = sphi 0, %s81
      %s84 = sphi 0, %s83
      %s98 = sphi 0, %s84
      %s102 = sphi 0, %s102
      %s104 = sphi 0, %s102
      %s105 = sphi 0, %s104
      %s119 = sphi 0, %s105
      %s123 = sphi 0, %s123
      %s125 = sphi 0, %s123
      %s126 = sphi 0, %s125
      %s140 = sphi 0, %s126
      %s144 = sphi 0, %s144
      %s146 = sphi 0, %s144
      %s147 = sphi 0, %s146
      %s161 = sphi 0, %s147
      %s165 = sphi 0, %s165
      %s167 = sphi 0, %s165
      %s168 = sphi 0, %s167
      %s182 = sphi 0, %s168
      %s188 = sphi 0, %s190
      %s191 = sphi 0, %s188
      %s192 = sphi 0, %s191
      %s208 = sphi 0, %s192
      %s214 = sphi 0, %s216
      %s217 = sphi 0, %s214
      %s218 = sphi 0, %s217
      %s234 = sphi 0, %s218
    $region4: #{multi_head_attention.1} parent=1 // loop_header_branch
      %24 = sbr.rel (%p22) target = $region8
    $region5: #{multi_head_attention.1} parent=1 // loop_body
      %s26 = ssub.s32 %s21, 1
      %s27 = ssub.s32 %s21, 2
      %s28 = sadd.s32 %s21, 1
      %s29 = ssub.s32 %s21, %s28
      %p30 = scmp.eq.s32.totalorder %s29, 0
      %s32 = sadd.s32 %s31, 1
      %s33 = scalar_select %p30, %s31, %s32
      %p36 = pneg %p30
      %p37 = scmp.eq.s32.totalorder %s21, 1
      %p38 = por %p36, %p37
      %p39 = scmp.ne.s32.totalorder %s31, %s34
      %p40 = scmp.eq.s32.totalorder %s21, 0
      %p41 = por %p39, %p40
      %p42 = scmp.ne.s32.totalorder %s31, %s34
      %p43 = scmp.eq.s32.totalorder %s26, 1
      %p44 = por %p42, %p43
      %p45 = scmp.ne.s32.totalorder %s34, %s35
      %p46 = scmp.eq.s32.totalorder %s26, 0
      %p47 = por %p45, %p46
      %p48 = scmp.ne.s32.totalorder %s34, %s35
      %p49 = scmp.eq.s32.totalorder %s27, 1
      %p50 = por %p48, %p49
      %p52 = scmp.ne.s32.totalorder %s35, %s51
      %p53 = scmp.eq.s32.totalorder %s27, 0
      %p54 = por %p52, %p53
      %s55 = ssub.s32 %s21, %s28
      %p56 = scmp.eq.s32.totalorder %s55, 0
      %s58 = sadd.s32 %s57, 1
      %s59 = scalar_select %p56, %s57, %s58
      %p62 = pneg %p56
      %p63 = scmp.eq.s32.totalorder %s21, 1
      %p64 = por %p62, %p63
      %p65 = scmp.ne.s32.totalorder %s57, %s60
      %p66 = scmp.eq.s32.totalorder %s21, 0
      %p67 = por %p65, %p66
      %p68 = scmp.ne.s32.totalorder %s57, %s60
      %p69 = scmp.eq.s32.totalorder %s26, 1
      %p70 = por %p68, %p69
      %p71 = scmp.ne.s32.totalorder %s60, %s61
      %p72 = scmp.eq.s32.totalorder %s26, 0
      %p73 = por %p71, %p72
      %p74 = scmp.ne.s32.totalorder %s60, %s61
      %p75 = scmp.eq.s32.totalorder %s27, 1
      %p76 = por %p74, %p75
      %p78 = scmp.ne.s32.totalorder %s61, %s77
      %p79 = scmp.eq.s32.totalorder %s27, 0
      %p80 = por %p78, %p79
      %s82 = sadd.s32 %s81, 1
      %p85 = scmp.eq.s32.totalorder %s21, 1
      %p86 = scmp.ne.s32.totalorder %s81, %s83
      %p87 = scmp.eq.s32.totalorder %s21, 0
      %p88 = por %p86, %p87
      %p89 = scmp.ne.s32.totalorder %s81, %s83
      %p90 = scmp.eq.s32.totalorder %s26, 1
      %p91 = por %p89, %p90
      %p92 = scmp.ne.s32.totalorder %s83, %s84
      %p93 = scmp.eq.s32.totalorder %s26, 0
      %p94 = por %p92, %p93
      %p95 = scmp.ne.s32.totalorder %s83, %s84
      %p96 = scmp.eq.s32.totalorder %s27, 1
      %p97 = por %p95, %p96
      %p99 = scmp.ne.s32.totalorder %s84, %s98
      %p100 = scmp.eq.s32.totalorder %s27, 0
      %p101 = por %p99, %p100
      %s103 = sadd.s32 %s102, 1
      %p106 = scmp.eq.s32.totalorder %s21, 1
      %p107 = scmp.ne.s32.totalorder %s102, %s104
      %p108 = scmp.eq.s32.totalorder %s21, 0
      %p109 = por %p107, %p108
      %p110 = scmp.ne.s32.totalorder %s102, %s104
      %p111 = scmp.eq.s32.totalorder %s26, 1
      %p112 = por %p110, %p111
      %p113 = scmp.ne.s32.totalorder %s104, %s105
      %p114 = scmp.eq.s32.totalorder %s26, 0
      %p115 = por %p113, %p114
      %p116 = scmp.ne.s32.totalorder %s104, %s105
      %p117 = scmp.eq.s32.totalorder %s27, 1
      %p118 = por %p116, %p117
      %p120 = scmp.ne.s32.totalorder %s105, %s119
      %p121 = scmp.eq.s32.totalorder %s27, 0
      %p122 = por %p120, %p121
      %s124 = sadd.s32 %s123, 1
      %p127 = scmp.eq.s32.totalorder %s21, 1
      %p128 = scmp.ne.s32.totalorder %s123, %s125
      %p129 = scmp.eq.s32.totalorder %s21, 0
      %p130 = por %p128, %p129
      %p131 = scmp.ne.s32.totalorder %s123, %s125
      %p132 = scmp.eq.s32.totalorder %s26, 1
      %p133 = por %p131, %p132
      %p134 = scmp.ne.s32.totalorder %s125, %s126
      %p135 = scmp.eq.s32.totalorder %s26, 0
      %p136 = por %p134, %p135
      %p137 = scmp.ne.s32.totalorder %s125, %s126
      %p138 = scmp.eq.s32.totalorder %s27, 1
      %p139 = por %p137, %p138
      %p141 = scmp.ne.s32.totalorder %s126, %s140
      %p142 = scmp.eq.s32.totalorder %s27, 0
      %p143 = por %p141, %p142
      %s145 = sadd.s32 %s144, 1
      %p148 = scmp.eq.s32.totalorder %s21, 1
      %p149 = scmp.ne.s32.totalorder %s144, %s146
      %p150 = scmp.eq.s32.totalorder %s21, 0
      %p151 = por %p149, %p150
      %p152 = scmp.ne.s32.totalorder %s144, %s146
      %p153 = scmp.eq.s32.totalorder %s26, 1
      %p154 = por %p152, %p153
      %p155 = scmp.ne.s32.totalorder %s146, %s147
      %p156 = scmp.eq.s32.totalorder %s26, 0
      %p157 = por %p155, %p156
      %p158 = scmp.ne.s32.totalorder %s146, %s147
      %p159 = scmp.eq.s32.totalorder %s27, 1
      %p160 = por %p158, %p159
      %p162 = scmp.ne.s32.totalorder %s147, %s161
      %p163 = scmp.eq.s32.totalorder %s27, 0
      %p164 = por %p162, %p163
      %s166 = sadd.s32 %s165, 1
      %p169 = scmp.eq.s32.totalorder %s21, 1
      %p170 = scmp.ne.s32.totalorder %s165, %s167
      %p171 = scmp.eq.s32.totalorder %s21, 0
      %p172 = por %p170, %p171
      %p173 = scmp.ne.s32.totalorder %s165, %s167
      %p174 = scmp.eq.s32.totalorder %s26, 1
      %p175 = por %p173, %p174
      %p176 = scmp.ne.s32.totalorder %s167, %s168
      %p177 = scmp.eq.s32.totalorder %s26, 0
      %p178 = por %p176, %p177
      %p179 = scmp.ne.s32.totalorder %s167, %s168
      %p180 = scmp.eq.s32.totalorder %s27, 1
      %p181 = por %p179, %p180
      %p183 = scmp.ne.s32.totalorder %s168, %s182
      %p184 = scmp.eq.s32.totalorder %s27, 0
      %p185 = por %p183, %p184
      %s186 = ssub.s32 %s21, %s28
      %p187 = scmp.eq.s32.totalorder %s186, 0
      %s189 = sadd.s32 %s188, 1
      %s190 = scalar_select %p187, %s188, %s189
      %p193 = pneg %p187
      %p194 = scmp.eq.s32.totalorder %s21, 1
      %p195 = por %p193, %p194
      %p196 = scmp.ne.s32.totalorder %s188, %s191
      %p197 = scmp.eq.s32.totalorder %s21, 0
      %p198 = por %p196, %p197
      %p199 = scmp.ne.s32.totalorder %s188, %s191
      %p200 = scmp.eq.s32.totalorder %s26, 1
      %p201 = por %p199, %p200
      %p202 = scmp.ne.s32.totalorder %s191, %s192
      %p203 = scmp.eq.s32.totalorder %s26, 0
      %p204 = por %p202, %p203
      %p205 = scmp.ne.s32.totalorder %s191, %s192
      %p206 = scmp.eq.s32.totalorder %s27, 1
      %p207 = por %p205, %p206
      %p209 = scmp.ne.s32.totalorder %s192, %s208
      %p210 = scmp.eq.s32.totalorder %s27, 0
      %p211 = por %p209, %p210
      %s212 = ssub.s32 %s21, %s28
      %p213 = scmp.eq.s32.totalorder %s212, 0
      %s215 = sadd.s32 %s214, 1
      %s216 = scalar_select %p213, %s214, %s215
      %p219 = pneg %p213
      %p220 = scmp.eq.s32.totalorder %s21, 1
      %p221 = por %p219, %p220
      %p222 = scmp.ne.s32.totalorder %s214, %s217
      %p223 = scmp.eq.s32.totalorder %s21, 0
      %p224 = por %p222, %p223
      %p225 = scmp.ne.s32.totalorder %s214, %s217
      %p226 = scmp.eq.s32.totalorder %s26, 1
      %p227 = por %p225, %p226
      %p228 = scmp.ne.s32.totalorder %s217, %s218
      %p229 = scmp.eq.s32.totalorder %s26, 0
      %p230 = por %p228, %p229
      %p231 = scmp.ne.s32.totalorder %s217, %s218
      %p232 = scmp.eq.s32.totalorder %s27, 1
      %p233 = por %p231, %p232
      %p235 = scmp.ne.s32.totalorder %s218, %s234
      %p236 = scmp.eq.s32.totalorder %s27, 0
      %p237 = por %p235, %p236
      %p238 = scmp.le.s32.totalorder 1, %s21
      %p239 = scmp.lt.s32.totalorder %s21, 3
      %p240 = pnand %p238, %p239
      %p241 = pneg %p240
      // Predicated region
      $region9: #{multi_head_attention.1} parent=5 // pred_check
        _
      $region10: #{multi_head_attention.1} parent=5 // pred_check_branch
        %243 = sbr.rel (%p240) target = $region12
      $region11: #{multi_head_attention.1} parent=5 // pred_region
        %s244 = ssub.s32 %s21, 1
        // Predicated region
        $region13: #{multi_head_attention.1} parent=11 // pred_check
          %p245 = pneg %p94
        $region14: #{multi_head_attention.1} parent=11 // pred_check_branch
          %247 = sbr.rel (%p245) target = $region16
        $region15: #{multi_head_attention.1} parent=11 // pred_region
          _
        $region16: #{multi_head_attention.1} parent=11 // pred_fallthru
          _
        // Predicated region
        $region17: #{multi_head_attention.1} parent=11 // pred_check
          %p248 = pneg %p115
        $region18: #{multi_head_attention.1} parent=11 // pred_check_branch
          %250 = sbr.rel (%p248) target = $region20
        $region19: #{multi_head_attention.1} parent=11 // pred_region
          _
        $region20: #{multi_head_attention.1} parent=11 // pred_fallthru
          _
        // Predicated region
        $region21: #{multi_head_attention.1} parent=11 // pred_check
          %p251 = pneg %p136
        $region22: #{multi_head_attention.1} parent=11 // pred_check_branch
          %253 = sbr.rel (%p251) target = $region24
        $region23: #{multi_head_attention.1} parent=11 // pred_region
          _
        $region24: #{multi_head_attention.1} parent=11 // pred_fallthru
          _
        // Predicated region
        $region25: #{multi_head_attention.1} parent=11 // pred_check
          %p254 = pneg %p157
        $region26: #{multi_head_attention.1} parent=11 // pred_check_branch
          %256 = sbr.rel (%p254) target = $region28
        $region27: #{multi_head_attention.1} parent=11 // pred_region
          _
        $region28: #{multi_head_attention.1} parent=11 // pred_fallthru
          _
        // Predicated region
        $region29: #{multi_head_attention.1} parent=11 // pred_check
          %p257 = pneg %p178
        $region30: #{multi_head_attention.1} parent=11 // pred_check_branch
          %259 = sbr.rel (%p257) target = $region32
        $region31: #{multi_head_attention.1} parent=11 // pred_region
          _
        $region32: #{multi_head_attention.1} parent=11 // pred_fallthru
          _
      $region12: #{multi_head_attention.1} parent=5 // pred_fallthru
        _
      %p260 = scmp.lt.s32.totalorder %s21, 2
      // Predicated region
      $region33: #{multi_head_attention.1} parent=5 // pred_check
        %p261 = pneg %p260
      $region34: #{multi_head_attention.1} parent=5 // pred_check_branch
        %263 = sbr.rel (%p261) target = $region36
      $region35: #{multi_head_attention.1} parent=5 // pred_region
        // Predicated region
        $region37: #{multi_head_attention.1} parent=35 // pred_check
          %p264 = pneg %p41
        $region38: #{multi_head_attention.1} parent=35 // pred_check_branch
          %266 = sbr.rel (%p264) target = $region40
        $region39: #{multi_head_attention.1} parent=35 // pred_region
          %p267 = scmp.lt.s32.totalorder %s21, 1
          %s268 = scalar_select %p267, %s21, 1
          %s269 = smul.addr %s268, 4
          %s270 = scalar_lea.vmem %s0, %s269
        $region40: #{multi_head_attention.1} parent=35 // pred_fallthru
          _
        // Predicated region
        $region41: #{multi_head_attention.1} parent=35 // pred_check
          %p271 = pneg %p67
        $region42: #{multi_head_attention.1} parent=35 // pred_check_branch
          %273 = sbr.rel (%p271) target = $region44
        $region43: #{multi_head_attention.1} parent=35 // pred_region
          %p274 = scmp.lt.s32.totalorder %s21, 1
          %s275 = scalar_select %p274, %s21, 1
          %s276 = smul.addr %s275, 2
          %s277 = smul.addr %s276, 4
          %s278 = scalar_lea.vmem %s1, %s277
        $region44: #{multi_head_attention.1} parent=35 // pred_fallthru
          _
      $region36: #{multi_head_attention.1} parent=5 // pred_fallthru
        _
      %p279 = scmp.le.s32.totalorder 1, %s21
      %p280 = scmp.lt.s32.totalorder %s21, 3
      %p281 = pnand %p279, %p280
      %p282 = pneg %p281
      // Predicated region
      $region45: #{multi_head_attention.1} parent=5 // pred_check
        _
      $region46: #{multi_head_attention.1} parent=5 // pred_check_branch
        %284 = sbr.rel (%p281) target = $region48
      $region47: #{multi_head_attention.1} parent=5 // pred_region
        %s285 = ssub.s32 %s21, 1
        %p286 = scmp.lt.s32.totalorder %s26, 1
        %s287 = scalar_select %p286, %s26, 1
        %s288 = smul.addr %s287, 4
        %s289 = scalar_lea.vmem %s0, %s288
        %p290 = pneg %p47
        %p291 = pneg %p44
        %p292 = scmp.lt.s32.totalorder %s26, 1
        %s293 = scalar_select %p292, %s26, 1
        %s294 = smul.addr %s293, 2
        %s295 = smul.addr %s294, 4
        %s296 = scalar_lea.vmem %s1, %s295
        %p297 = pneg %p73
        %p298 = pneg %p70
        %p299 = pneg %p94
        %p300 = pneg %p91
        %p301 = pneg %p115
        %p302 = pneg %p112
        %p303 = pneg %p136
        %p304 = pneg %p133
        %p305 = pneg %p157
        %p306 = pneg %p154
        %p307 = pneg %p178
        %p308 = pneg %p175
        %p309 = pneg %p204
        %p310 = pneg %p201
        %s311 = sand.u32 %s191, 1
        %s312 = scalar_lea.sflag [#allocation3], %s311
        %s313 = sand.u32 %s191, 1
        %s314 = smul.addr %s313, 8
        %s315 = scalar_lea.vmem [#allocation2], %s314
        %p316 = pneg %p230
        %p317 = pneg %p227
        %s318 = sand.u32 %s217, 1
        %s319 = scalar_lea.sflag [#allocation5], %s318
        %s320 = sand.u32 %s217, 1
        %s321 = smul.addr %s320, 32
        %s322 = scalar_lea.vmem [#allocation4], %s321
        %p323 = scmp.lt.s32.totalorder %s26, 1
        %s324 = scalar_select %p323, %s26, 1
        %s325 = smul.addr %s324, 4
        %s326 = scalar_lea.vmem %s0, %s325
        %p327 = scmp.lt.s32.totalorder %s26, 1
        %s328 = scalar_select %p327, %s26, 1
        %s329 = smul.addr %s328, 2
        %s330 = smul.addr %s329, 4
        %s331 = scalar_lea.vmem %s1, %s330
        %s332 = smul.u32 4, %s26
        %v334 = vld [vmem:[%s326] sm:$0xf]
        %v335 = vld [vmem:[%s331] sm:$0xf]
        %v336 = vld [vmem:[%s331 + $0x4] sm:$0x1]
        %v337 = vld [vmem:[%s2] sm:$0xf]
        %v338 = vld [vmem:[%s2 + $0x4] sm:$0xf]
        %v339 = vld [vmem:[%s2 + $0x8] sm:$0xf]
        %v340 = vld [vmem:[%s2 + $0xc] sm:$0xf]
        %v345 = vunpack.c.l.b16 %v337
        %v346 = vunpack.c.l.b16 %v338
        %v347 = vunpack.c.l.b16 %v339
        %v348 = vunpack.c.l.b16 %v340
        %v349 = vpack.c.b16 %v346, %v345
        %v350 = vpack.c.b16 %v348, %v347
        %vm353 = vcmask 261120
        %v355 = vsel %vm353, %v334, 0
        %357 = vmatprep.subr.bf16.mxu0 0
        %358 = vmatpush1.bf16.msra.mxu0 %v349
        %359 = vmatprep.subr.bf16.mxu0 0
        %360 = vmatpush1.bf16.msra.mxu0 %v350
        %361 = vmatprep.subr.bf16.mxu0 0
        %362 = vmatpush1.bf16.msra.mxu0 0
        %363 = vmatprep.subr.bf16.mxu0 0
        %364 = vmatpush1.bf16.msra.mxu0 0
        %365 = vmatprep.subr.bf16.mxu0 0
        %366 = vmatpush1.bf16.msra.mxu0 0
        %367 = vmatprep.subr.bf16.mxu0 0
        %368 = vmatpush1.bf16.msra.mxu0 0
        %369 = vmatprep.subr.bf16.mxu0 0
        %370 = vmatpush1.bf16.msra.mxu0 0
        %371 = vmatprep.subr.bf16.mxu0 0
        %372 = vmatpush1.bf16.msra.mxu0 0
        %373 = vmatprep.subr.bf16.mxu0 0
        %374 = vmatpush1.bf16.msra.mxu0 0
        %375 = vmatprep.subr.bf16.mxu0 0
        %376 = vmatpush1.bf16.msra.mxu0 0
        %377 = vmatprep.subr.bf16.mxu0 0
        %378 = vmatpush1.bf16.msra.mxu0 0
        %379 = vmatprep.subr.bf16.mxu0 0
        %380 = vmatpush1.bf16.msra.mxu0 0
        %381 = vmatprep.subr.bf16.mxu0 0
        %382 = vmatpush1.bf16.msra.mxu0 0
        %383 = vmatprep.subr.bf16.mxu0 0
        %384 = vmatpush1.bf16.msra.mxu0 0
        %385 = vmatprep.subr.bf16.mxu0 0
        %386 = vmatpush1.bf16.msra.mxu0 0
        %387 = vmatprep.subr.bf16.mxu0 0
        %388 = vmatpush1.bf16.msra.mxu0 0
        %389 = vmatprep.mubr.bf16.mxu0 0
        %390 = vmatmul.mubr.bf16.gmra.mrb[0].mxu0 %v355
        %v391 = vpop.f32.mrb[0].mxu0
        %v392 = vadd.f32 0.0, %v391
        %v393 = vpop.f32.mrb[0].mxu0
        %v394 = vpop.f32.mrb[0].mxu0
        %v395 = vpop.f32.mrb[0].mxu0
        %396 = vdwg.mxu0
        %v397 = vld [vmem:[%s3] sm:$0xf]
        %v398 = vld [vmem:[%s3 + $0x4] sm:$0xf]
        %v399 = vld [vmem:[%s3 + $0x8] sm:$0xf]
        %v402 = vunpack.c.l.b16 %v335
        %v403 = vunpack.c.l.b16 %v336
        %v404 = vpack.c.b16 %v403, %v402
        %v408 = vunpack.c.l.b16 %v397
        %v409 = vunpack.c.l.b16 %v398
        %v410 = vunpack.c.l.b16 %v399
        %v411 = vpack.c.b16 %v409, %v408
        %v412 = vpack.c.b16 %v410, %v410
        %vm414 = vcmask 195584
        %v416 = vsel %vm414, %v404, 0
        %vm418 = vcmask 1043456
        %v420 = vsel %vm418, %v412, 0
        %422 = vmatprep.subr.bf16.mxu0 0
        %423 = vmatpush1.bf16.msra.mxu0 %v411
        %424 = vmatprep.subr.bf16.mxu0 0
        %425 = vmatpush1.bf16.msra.mxu0 %v420
        %426 = vmatprep.subr.bf16.mxu0 0
        %427 = vmatpush1.bf16.msra.mxu0 0
        %428 = vmatprep.subr.bf16.mxu0 0
        %429 = vmatpush1.bf16.msra.mxu0 0
        %430 = vmatprep.subr.bf16.mxu0 0
        %431 = vmatpush1.bf16.msra.mxu0 0
        %432 = vmatprep.subr.bf16.mxu0 0
        %433 = vmatpush1.bf16.msra.mxu0 0
        %434 = vmatprep.subr.bf16.mxu0 0
        %435 = vmatpush1.bf16.msra.mxu0 0
        %436 = vmatprep.subr.bf16.mxu0 0
        %437 = vmatpush1.bf16.msra.mxu0 0
        %438 = vmatprep.subr.bf16.mxu0 0
        %439 = vmatpush1.bf16.msra.mxu0 0
        %440 = vmatprep.subr.bf16.mxu0 0
        %441 = vmatpush1.bf16.msra.mxu0 0
        %442 = vmatprep.subr.bf16.mxu0 0
        %443 = vmatpush1.bf16.msra.mxu0 0
        %444 = vmatprep.subr.bf16.mxu0 0
        %445 = vmatpush1.bf16.msra.mxu0 0
        %446 = vmatprep.subr.bf16.mxu0 0
        %447 = vmatpush1.bf16.msra.mxu0 0
        %448 = vmatprep.subr.bf16.mxu0 0
        %449 = vmatpush1.bf16.msra.mxu0 0
        %450 = vmatprep.subr.bf16.mxu0 0
        %451 = vmatpush1.bf16.msra.mxu0 0
        %452 = vmatprep.subr.bf16.mxu0 0
        %453 = vmatpush1.bf16.msra.mxu0 0
        %454 = vmatprep.mubr.bf16.mxu0 0
        %455 = vmatmul.mubr.bf16.gmra.mrb[0].mxu0 %v416
        %v456 = vpop.f32.mrb[0].mxu0
        %v457 = vadd.f32 0.0, %v456
        %v458 = vpop.f32.mrb[0].mxu0
        %v459 = vpop.f32.mrb[0].mxu0
        %v460 = vadd.f32 0.0, %v459
        %v461 = vpop.f32.mrb[0].mxu0
        %462 = vdwg.mxu0
        %v463 = vld [vmem:[%s4] sm:$0xf]
        %v464 = vld [vmem:[%s4 + $0x4] sm:$0xf]
        %v465 = vld [vmem:[%s4 + $0x8] sm:$0xf]
        %v469 = vunpack.c.l.b16 %v463
        %v470 = vunpack.c.l.b16 %v464
        %v471 = vunpack.c.l.b16 %v465
        %v472 = vpack.c.b16 %v470, %v469
        %v473 = vpack.c.b16 %v471, %v471
        %v476 = vsel %vm418, %v473, 0
        %478 = vmatprep.subr.bf16.mxu0 0
        %479 = vmatpush1.bf16.msra.mxu0 %v472
        %480 = vmatprep.subr.bf16.mxu0 0
        %481 = vmatpush1.bf16.msra.mxu0 %v476
        %482 = vmatprep.subr.bf16.mxu0 0
        %483 = vmatpush1.bf16.msra.mxu0 0
        %484 = vmatprep.subr.bf16.mxu0 0
        %485 = vmatpush1.bf16.msra.mxu0 0
        %486 = vmatprep.subr.bf16.mxu0 0
        %487 = vmatpush1.bf16.msra.mxu0 0
        %488 = vmatprep.subr.bf16.mxu0 0
        %489 = vmatpush1.bf16.msra.mxu0 0
        %490 = vmatprep.subr.bf16.mxu0 0
        %491 = vmatpush1.bf16.msra.mxu0 0
        %492 = vmatprep.subr.bf16.mxu0 0
        %493 = vmatpush1.bf16.msra.mxu0 0
        %494 = vmatprep.subr.bf16.mxu0 0
        %495 = vmatpush1.bf16.msra.mxu0 0
        %496 = vmatprep.subr.bf16.mxu0 0
        %497 = vmatpush1.bf16.msra.mxu0 0
        %498 = vmatprep.subr.bf16.mxu0 0
        %499 = vmatpush1.bf16.msra.mxu0 0
        %500 = vmatprep.subr.bf16.mxu0 0
        %501 = vmatpush1.bf16.msra.mxu0 0
        %502 = vmatprep.subr.bf16.mxu0 0
        %503 = vmatpush1.bf16.msra.mxu0 0
        %504 = vmatprep.subr.bf16.mxu0 0
        %505 = vmatpush1.bf16.msra.mxu0 0
        %506 = vmatprep.subr.bf16.mxu0 0
        %507 = vmatpush1.bf16.msra.mxu0 0
        %508 = vmatprep.subr.bf16.mxu0 0
        %509 = vmatpush1.bf16.msra.mxu0 0
        %510 = vmatprep.mubr.bf16.mxu0 0
        %511 = vmatmul.mubr.bf16.gmra.mrb[0].mxu0 %v416
        %v512 = vpop.f32.mrb[0].mxu0
        %v513 = vadd.f32 0.0, %v512
        %v514 = vpop.f32.mrb[0].mxu0
        %v515 = vpop.f32.mrb[0].mxu0
        %v516 = vadd.f32 0.0, %v515
        %v517 = vpop.f32.mrb[0].mxu0
        %518 = vdwg.mxu0
        %v519 = vmul.f32 %v392, 0.35355338
        %v520 = vpack.c.bf16 %v519, %v519
        %v521 = vpack.c.bf16 %v460, %v457
        %vm522 = vcmask 64512
        %v524 = vsel %vm522, %v520, 0
        %v527 = vsel %vm522, %v521, 0
        %529 = vmatprep.subr.bf16.mxu0 0
        %530 = vmatpush1.bf16.xpose.msra.mxu0 %v527
        %531 = vmatprep.subr.bf16.mxu0 0
        %532 = vmatpush1.bf16.xpose.msra.mxu0 0
        %533 = vmatprep.subr.bf16.mxu0 0
        %534 = vmatpush1.bf16.xpose.msra.mxu0 0
        %535 = vmatprep.subr.bf16.mxu0 0
        %536 = vmatpush1.bf16.xpose.msra.mxu0 0
        %537 = vmatprep.subr.bf16.mxu0 0
        %538 = vmatpush1.bf16.xpose.msra.mxu0 0
        %539 = vmatprep.subr.bf16.mxu0 0
        %540 = vmatpush1.bf16.xpose.msra.mxu0 0
        %541 = vmatprep.subr.bf16.mxu0 0
        %542 = vmatpush1.bf16.xpose.msra.mxu0 0
        %543 = vmatprep.subr.bf16.mxu0 0
        %544 = vmatpush1.bf16.xpose.msra.mxu0 0
        %545 = vmatprep.subr.bf16.mxu0 0
        %546 = vmatpush1.bf16.xpose.msra.mxu0 0
        %547 = vmatprep.subr.bf16.mxu0 0
        %548 = vmatpush1.bf16.xpose.msra.mxu0 0
        %549 = vmatprep.subr.bf16.mxu0 0
        %550 = vmatpush1.bf16.xpose.msra.mxu0 0
        %551 = vmatprep.subr.bf16.mxu0 0
        %552 = vmatpush1.bf16.xpose.msra.mxu0 0
        %553 = vmatprep.subr.bf16.mxu0 0
        %554 = vmatpush1.bf16.xpose.msra.mxu0 0
        %555 = vmatprep.subr.bf16.mxu0 0
        %556 = vmatpush1.bf16.xpose.msra.mxu0 0
        %557 = vmatprep.subr.bf16.mxu0 0
        %558 = vmatpush1.bf16.xpose.msra.mxu0 0
        %559 = vmatprep.subr.bf16.mxu0 0
        %560 = vmatpush1.bf16.xpose.msra.mxu0 0
        %561 = vmatprep.mubr.bf16.mxu0 0
        %562 = vmatmul.mubr.bf16.gmra.mrb[0].mxu0 %v524
        %v563 = vpop.f32.mrb[0].mxu0
        %v564 = vadd.f32 0.0, %v563
        %v565 = vpop.f32.mrb[0].mxu0
        %v566 = vpop.f32.mrb[0].mxu0
        %v567 = vpop.f32.mrb[0].mxu0
        %568 = vdwg.mxu0
        %vm569 = vcmask 80896
        %v570 = vsel %vm569, %v564, -inf
        %571 = vmax.xlane.f32.xlu0 %v570
        %v572 = vpop.xlane.xlu0 %571
        %v573 = vsub.f32 %v564, %v572
        %v574 = vmul.f32 %v573, 1.442695
        %v575 = vpow.pop %v574
        %v576 = vsel %vm569, %v575, 0.0
        %577 = vadd.xlane.f32.xlu0 %v576
        %v578 = vpop.xlane.xlu0 %577
        %v579 = vrcp.pop %v578
        %v580 = vmul.f32 %v575, %v579
        %581 = vst.msk [vmem:[%s322] sm:$0xff] %vm569, %v580
        %v582 = vpack.c.bf16 %v580, %v580
        %v583 = vpack.c.bf16 %v516, %v513
        %v585 = vsel %vm569, %v582, 0
        %vm587 = vcmask 1044480
        %v589 = vsel %vm587, %v583, 0
        %591 = vmatprep.subr.bf16.mxu0 0
        %592 = vmatpush1.bf16.msra.mxu0 %v589
        %593 = vmatprep.subr.bf16.mxu0 0
        %594 = vmatpush1.bf16.msra.mxu0 0
        %595 = vmatprep.subr.bf16.mxu0 0
        %596 = vmatpush1.bf16.msra.mxu0 0
        %597 = vmatprep.subr.bf16.mxu0 0
        %598 = vmatpush1.bf16.msra.mxu0 0
        %599 = vmatprep.subr.bf16.mxu0 0
        %600 = vmatpush1.bf16.msra.mxu0 0
        %601 = vmatprep.subr.bf16.mxu0 0
        %602 = vmatpush1.bf16.msra.mxu0 0
        %603 = vmatprep.subr.bf16.mxu0 0
        %604 = vmatpush1.bf16.msra.mxu0 0
        %605 = vmatprep.subr.bf16.mxu0 0
        %606 = vmatpush1.bf16.msra.mxu0 0
        %607 = vmatprep.subr.bf16.mxu0 0
        %608 = vmatpush1.bf16.msra.mxu0 0
        %609 = vmatprep.subr.bf16.mxu0 0
        %610 = vmatpush1.bf16.msra.mxu0 0
        %611 = vmatprep.subr.bf16.mxu0 0
        %612 = vmatpush1.bf16.msra.mxu0 0
        %613 = vmatprep.subr.bf16.mxu0 0
        %614 = vmatpush1.bf16.msra.mxu0 0
        %615 = vmatprep.subr.bf16.mxu0 0
        %616 = vmatpush1.bf16.msra.mxu0 0
        %617 = vmatprep.subr.bf16.mxu0 0
        %618 = vmatpush1.bf16.msra.mxu0 0
        %619 = vmatprep.subr.bf16.mxu0 0
        %620 = vmatpush1.bf16.msra.mxu0 0
        %621 = vmatprep.subr.bf16.mxu0 0
        %622 = vmatpush1.bf16.msra.mxu0 0
        %623 = vmatprep.mubr.bf16.mxu0 0
        %624 = vmatmul.mubr.bf16.gmra.mrb[0].mxu0 %v585
        %v625 = vpop.f32.mrb[0].mxu0
        %v626 = vadd.f32 0.0, %v625
        %v627 = vpop.f32.mrb[0].mxu0
        %v628 = vpop.f32.mrb[0].mxu0
        %v629 = vpop.f32.mrb[0].mxu0
        %630 = vdwg.mxu0
        %v631 = vpack.c.bf16 %v626, %v626
        %v632 = vld [vmem:[%s5] sm:$0x3]
        %s633 = scalar_lea.vmem %s2, 16
        %v634 = vld [vmem:[%s633] sm:$0xf]
        %v635 = vld [vmem:[%s633 + $0x4] sm:$0xf]
        %v636 = vld [vmem:[%s633 + $0x8] sm:$0xf]
        %v637 = vld [vmem:[%s633 + $0xc] sm:$0xf]
        %v642 = vunpack.c.l.b16 %v634
        %v643 = vunpack.c.l.b16 %v635
        %v644 = vunpack.c.l.b16 %v636
        %v645 = vunpack.c.l.b16 %v637
        %v646 = vpack.c.b16 %v643, %v642
        %v647 = vpack.c.b16 %v645, %v644
        %650 = vmatprep.subr.bf16.mxu0 0
        %651 = vmatpush1.bf16.msra.mxu0 %v646
        %652 = vmatprep.subr.bf16.mxu0 0
        %653 = vmatpush1.bf16.msra.mxu0 %v647
        %654 = vmatprep.subr.bf16.mxu0 0
        %655 = vmatpush1.bf16.msra.mxu0 0
        %656 = vmatprep.subr.bf16.mxu0 0
        %657 = vmatpush1.bf16.msra.mxu0 0
        %658 = vmatprep.subr.bf16.mxu0 0
        %659 = vmatpush1.bf16.msra.mxu0 0
        %660 = vmatprep.subr.bf16.mxu0 0
        %661 = vmatpush1.bf16.msra.mxu0 0
        %662 = vmatprep.subr.bf16.mxu0 0
        %663 = vmatpush1.bf16.msra.mxu0 0
        %664 = vmatprep.subr.bf16.mxu0 0
        %665 = vmatpush1.bf16.msra.mxu0 0
        %666 = vmatprep.subr.bf16.mxu0 0
        %667 = vmatpush1.bf16.msra.mxu0 0
        %668 = vmatprep.subr.bf16.mxu0 0
        %669 = vmatpush1.bf16.msra.mxu0 0
        %670 = vmatprep.subr.bf16.mxu0 0
        %671 = vmatpush1.bf16.msra.mxu0 0
        %672 = vmatprep.subr.bf16.mxu0 0
        %673 = vmatpush1.bf16.msra.mxu0 0
        %674 = vmatprep.subr.bf16.mxu0 0
        %675 = vmatpush1.bf16.msra.mxu0 0
        %676 = vmatprep.subr.bf16.mxu0 0
        %677 = vmatpush1.bf16.msra.mxu0 0
        %678 = vmatprep.subr.bf16.mxu0 0
        %679 = vmatpush1.bf16.msra.mxu0 0
        %680 = vmatprep.subr.bf16.mxu0 0
        %681 = vmatpush1.bf16.msra.mxu0 0
        %682 = vmatprep.mubr.bf16.mxu0 0
        %683 = vmatmul.mubr.bf16.gmra.mrb[0].mxu0 %v355
        %v684 = vpop.f32.mrb[0].mxu0
        %v685 = vadd.f32 0.0, %v684
        %v686 = vpop.f32.mrb[0].mxu0
        %v687 = vpop.f32.mrb[0].mxu0
        %v688 = vpop.f32.mrb[0].mxu0
        %689 = vdwg.mxu0
        %s690 = scalar_lea.vmem %s3, 12
        %v691 = vld [vmem:[%s690] sm:$0xf]
        %v692 = vld [vmem:[%s690 + $0x4] sm:$0xf]
        %v693 = vld [vmem:[%s690 + $0x8] sm:$0xf]
        %v697 = vunpack.c.l.b16 %v691
        %v698 = vunpack.c.l.b16 %v692
        %v699 = vunpack.c.l.b16 %v693
        %v700 = vpack.c.b16 %v698, %v697
        %v701 = vpack.c.b16 %v699, %v699
        %v704 = vsel %vm418, %v701, 0
        %706 = vmatprep.subr.bf16.mxu0 0
        %707 = vmatpush1.bf16.msra.mxu0 %v700
        %708 = vmatprep.subr.bf16.mxu0 0
        %709 = vmatpush1.bf16.msra.mxu0 %v704
        %710 = vmatprep.subr.bf16.mxu0 0
        %711 = vmatpush1.bf16.msra.mxu0 0
        %712 = vmatprep.subr.bf16.mxu0 0
        %713 = vmatpush1.bf16.msra.mxu0 0
        %714 = vmatprep.subr.bf16.mxu0 0
        %715 = vmatpush1.bf16.msra.mxu0 0
        %716 = vmatprep.subr.bf16.mxu0 0
        %717 = vmatpush1.bf16.msra.mxu0 0
        %718 = vmatprep.subr.bf16.mxu0 0
        %719 = vmatpush1.bf16.msra.mxu0 0
        %720 = vmatprep.subr.bf16.mxu0 0
        %721 = vmatpush1.bf16.msra.mxu0 0
        %722 = vmatprep.subr.bf16.mxu0 0
        %723 = vmatpush1.bf16.msra.mxu0 0
        %724 = vmatprep.subr.bf16.mxu0 0
        %725 = vmatpush1.bf16.msra.mxu0 0
        %726 = vmatprep.subr.bf16.mxu0 0
        %727 = vmatpush1.bf16.msra.mxu0 0
        %728 = vmatprep.subr.bf16.mxu0 0
        %729 = vmatpush1.bf16.msra.mxu0 0
        %730 = vmatprep.subr.bf16.mxu0 0
        %731 = vmatpush1.bf16.msra.mxu0 0
        %732 = vmatprep.subr.bf16.mxu0 0
        %733 = vmatpush1.bf16.msra.mxu0 0
        %734 = vmatprep.subr.bf16.mxu0 0
        %735 = vmatpush1.bf16.msra.mxu0 0
        %736 = vmatprep.subr.bf16.mxu0 0
        %737 = vmatpush1.bf16.msra.mxu0 0
        %738 = vmatprep.mubr.bf16.mxu0 0
        %739 = vmatmul.mubr.bf16.gmra.mrb[0].mxu0 %v416
        %v740 = vpop.f32.mrb[0].mxu0
        %v741 = vadd.f32 0.0, %v740
        %v742 = vpop.f32.mrb[0].mxu0
        %v743 = vpop.f32.mrb[0].mxu0
        %v744 = vadd.f32 0.0, %v743
        %v745 = vpop.f32.mrb[0].mxu0
        %746 = vdwg.mxu0
        %s747 = scalar_lea.vmem %s4, 12
        %v748 = vld [vmem:[%s747] sm:$0xf]
        %v749 = vld [vmem:[%s747 + $0x4] sm:$0xf]
        %v750 = vld [vmem:[%s747 + $0x8] sm:$0xf]
        %v754 = vunpack.c.l.b16 %v748
        %v755 = vunpack.c.l.b16 %v749
        %v756 = vunpack.c.l.b16 %v750
        %v757 = vpack.c.b16 %v755, %v754
        %v758 = vpack.c.b16 %v756, %v756
        %v761 = vsel %vm418, %v758, 0
        %763 = vmatprep.subr.bf16.mxu0 0
        %764 = vmatpush1.bf16.msra.mxu0 %v757
        %765 = vmatprep.subr.bf16.mxu0 0
        %766 = vmatpush1.bf16.msra.mxu0 %v761
        %767 = vmatprep.subr.bf16.mxu0 0
        %768 = vmatpush1.bf16.msra.mxu0 0
        %769 = vmatprep.subr.bf16.mxu0 0
        %770 = vmatpush1.bf16.msra.mxu0 0
        %771 = vmatprep.subr.bf16.mxu0 0
        %772 = vmatpush1.bf16.msra.mxu0 0
        %773 = vmatprep.subr.bf16.mxu0 0
        %774 = vmatpush1.bf16.msra.mxu0 0
        %775 = vmatprep.subr.bf16.mxu0 0
        %776 = vmatpush1.bf16.msra.mxu0 0
        %777 = vmatprep.subr.bf16.mxu0 0
        %778 = vmatpush1.bf16.msra.mxu0 0
        %779 = vmatprep.subr.bf16.mxu0 0
        %780 = vmatpush1.bf16.msra.mxu0 0
        %781 = vmatprep.subr.bf16.mxu0 0
        %782 = vmatpush1.bf16.msra.mxu0 0
        %783 = vmatprep.subr.bf16.mxu0 0
        %784 = vmatpush1.bf16.msra.mxu0 0
        %785 = vmatprep.subr.bf16.mxu0 0
        %786 = vmatpush1.bf16.msra.mxu0 0
        %787 = vmatprep.subr.bf16.mxu0 0
        %788 = vmatpush1.bf16.msra.mxu0 0
        %789 = vmatprep.subr.bf16.mxu0 0
        %790 = vmatpush1.bf16.msra.mxu0 0
        %791 = vmatprep.subr.bf16.mxu0 0
        %792 = vmatpush1.bf16.msra.mxu0 0
        %793 = vmatprep.subr.bf16.mxu0 0
        %794 = vmatpush1.bf16.msra.mxu0 0
        %795 = vmatprep.mubr.bf16.mxu0 0
        %796 = vmatmul.mubr.bf16.gmra.mrb[0].mxu0 %v416
        %v797 = vpop.f32.mrb[0].mxu0
        %v798 = vadd.f32 0.0, %v797
        %v799 = vpop.f32.mrb[0].mxu0
        %v800 = vpop.f32.mrb[0].mxu0
        %v801 = vadd.f32 0.0, %v800
        %v802 = vpop.f32.mrb[0].mxu0
        %803 = vdwg.mxu0
        %v804 = vmul.f32 %v685, 0.35355338
        %v805 = vpack.c.bf16 %v804, %v804
        %v806 = vpack.c.bf16 %v744, %v741
        %v808 = vsel %vm522, %v805, 0
        %v811 = vsel %vm522, %v806, 0
        %813 = vmatprep.subr.bf16.mxu0 0
        %814 = vmatpush1.bf16.xpose.msra.mxu0 %v811
        %815 = vmatprep.subr.bf16.mxu0 0
        %816 = vmatpush1.bf16.xpose.msra.mxu0 0
        %817 = vmatprep.subr.bf16.mxu0 0
        %818 = vmatpush1.bf16.xpose.msra.mxu0 0
        %819 = vmatprep.subr.bf16.mxu0 0
        %820 = vmatpush1.bf16.xpose.msra.mxu0 0
        %821 = vmatprep.subr.bf16.mxu0 0
        %822 = vmatpush1.bf16.xpose.msra.mxu0 0
        %823 = vmatprep.subr.bf16.mxu0 0
        %824 = vmatpush1.bf16.xpose.msra.mxu0 0
        %825 = vmatprep.subr.bf16.mxu0 0
        %826 = vmatpush1.bf16.xpose.msra.mxu0 0
        %827 = vmatprep.subr.bf16.mxu0 0
        %828 = vmatpush1.bf16.xpose.msra.mxu0 0
        %829 = vmatprep.subr.bf16.mxu0 0
        %830 = vmatpush1.bf16.xpose.msra.mxu0 0
        %831 = vmatprep.subr.bf16.mxu0 0
        %832 = vmatpush1.bf16.xpose.msra.mxu0 0
        %833 = vmatprep.subr.bf16.mxu0 0
        %834 = vmatpush1.bf16.xpose.msra.mxu0 0
        %835 = vmatprep.subr.bf16.mxu0 0
        %836 = vmatpush1.bf16.xpose.msra.mxu0 0
        %837 = vmatprep.subr.bf16.mxu0 0
        %838 = vmatpush1.bf16.xpose.msra.mxu0 0
        %839 = vmatprep.subr.bf16.mxu0 0
        %840 = vmatpush1.bf16.xpose.msra.mxu0 0
        %841 = vmatprep.subr.bf16.mxu0 0
        %842 = vmatpush1.bf16.xpose.msra.mxu0 0
        %843 = vmatprep.subr.bf16.mxu0 0
        %844 = vmatpush1.bf16.xpose.msra.mxu0 0
        %845 = vmatprep.mubr.bf16.mxu0 0
        %846 = vmatmul.mubr.bf16.gmra.mrb[0].mxu0 %v808
        %v847 = vpop.f32.mrb[0].mxu0
        %v848 = vadd.f32 0.0, %v847
        %v849 = vpop.f32.mrb[0].mxu0
        %v850 = vpop.f32.mrb[0].mxu0
        %v851 = vpop.f32.mrb[0].mxu0
        %852 = vdwg.mxu0
        %v853 = vsel %vm569, %v848, -inf
        %854 = vmax.xlane.f32.xlu0 %v853
        %v855 = vpop.xlane.xlu0 %854
        %v856 = vsub.f32 %v848, %v855
        %v857 = vmul.f32 %v856, 1.442695
        %v858 = vpow.pop %v857
        %v859 = vsel %vm569, %v858, 0.0
        %860 = vadd.xlane.f32.xlu0 %v859
        %v861 = vpop.xlane.xlu0 %860
        %v862 = vrcp.pop %v861
        %v863 = vmul.f32 %v858, %v862
        %s864 = scalar_lea.vmem %s322, 8 [#allocation4]
        %865 = vst.msk [vmem:[%s864] sm:$0xff] %vm569, %v863
        %v866 = vpack.c.bf16 %v863, %v863
        %v867 = vpack.c.bf16 %v801, %v798
        %v869 = vsel %vm569, %v866, 0
        %v872 = vsel %vm587, %v867, 0
        %874 = vmatprep.subr.bf16.mxu0 0
        %875 = vmatpush1.bf16.msra.mxu0 %v872
        %876 = vmatprep.subr.bf16.mxu0 0
        %877 = vmatpush1.bf16.msra.mxu0 0
        %878 = vmatprep.subr.bf16.mxu0 0
        %879 = vmatpush1.bf16.msra.mxu0 0
        %880 = vmatprep.subr.bf16.mxu0 0
        %881 = vmatpush1.bf16.msra.mxu0 0
        %882 = vmatprep.subr.bf16.mxu0 0
        %883 = vmatpush1.bf16.msra.mxu0 0
        %884 = vmatprep.subr.bf16.mxu0 0
        %885 = vmatpush1.bf16.msra.mxu0 0
        %886 = vmatprep.subr.bf16.mxu0 0
        %887 = vmatpush1.bf16.msra.mxu0 0
        %888 = vmatprep.subr.bf16.mxu0 0
        %889 = vmatpush1.bf16.msra.mxu0 0
        %890 = vmatprep.subr.bf16.mxu0 0
        %891 = vmatpush1.bf16.msra.mxu0 0
        %892 = vmatprep.subr.bf16.mxu0 0
        %893 = vmatpush1.bf16.msra.mxu0 0
        %894 = vmatprep.subr.bf16.mxu0 0
        %895 = vmatpush1.bf16.msra.mxu0 0
        %896 = vmatprep.subr.bf16.mxu0 0
        %897 = vmatpush1.bf16.msra.mxu0 0
        %898 = vmatprep.subr.bf16.mxu0 0
        %899 = vmatpush1.bf16.msra.mxu0 0
        %900 = vmatprep.subr.bf16.mxu0 0
        %901 = vmatpush1.bf16.msra.mxu0 0
        %902 = vmatprep.subr.bf16.mxu0 0
        %903 = vmatpush1.bf16.msra.mxu0 0
        %904 = vmatprep.subr.bf16.mxu0 0
        %905 = vmatpush1.bf16.msra.mxu0 0
        %906 = vmatprep.mubr.bf16.mxu0 0
        %907 = vmatmul.mubr.bf16.gmra.mrb[0].mxu0 %v869
        %v908 = vpop.f32.mrb[0].mxu0
        %v909 = vadd.f32 0.0, %v908
        %v910 = vpop.f32.mrb[0].mxu0
        %v911 = vpop.f32.mrb[0].mxu0
        %v912 = vpop.f32.mrb[0].mxu0
        %913 = vdwg.mxu0
        %v914 = vpack.c.bf16 %v909, %v909
        %s915 = scalar_lea.vmem %s5, 2
        %v916 = vld [vmem:[%s915] sm:$0x3]
        %vm917 = vcmask 31744
        %v919 = vsel %vm917, %v914, 0
        %vm921 = vcmask 1041408
        %v923 = vsel %vm921, %v916, 0
        %925 = vmatprep.subr.bf16.mxu0 0
        %926 = vmatpush1.bf16.msra.mxu0 %v923
        %927 = vmatprep.subr.bf16.mxu0 0
        %928 = vmatpush1.bf16.msra.mxu0 0
        %929 = vmatprep.subr.bf16.mxu0 0
        %930 = vmatpush1.bf16.msra.mxu0 0
        %931 = vmatprep.subr.bf16.mxu0 0
        %932 = vmatpush1.bf16.msra.mxu0 0
        %933 = vmatprep.subr.bf16.mxu0 0
        %934 = vmatpush1.bf16.msra.mxu0 0
        %935 = vmatprep.subr.bf16.mxu0 0
        %936 = vmatpush1.bf16.msra.mxu0 0
        %937 = vmatprep.subr.bf16.mxu0 0
        %938 = vmatpush1.bf16.msra.mxu0 0
        %939 = vmatprep.subr.bf16.mxu0 0
        %940 = vmatpush1.bf16.msra.mxu0 0
        %941 = vmatprep.subr.bf16.mxu0 0
        %942 = vmatpush1.bf16.msra.mxu0 0
        %943 = vmatprep.subr.bf16.mxu0 0
        %944 = vmatpush1.bf16.msra.mxu0 0
        %945 = vmatprep.subr.bf16.mxu0 0
        %946 = vmatpush1.bf16.msra.mxu0 0
        %947 = vmatprep.subr.bf16.mxu0 0
        %948 = vmatpush1.bf16.msra.mxu0 0
        %949 = vmatprep.subr.bf16.mxu0 0
        %950 = vmatpush1.bf16.msra.mxu0 0
        %951 = vmatprep.subr.bf16.mxu0 0
        %952 = vmatpush1.bf16.msra.mxu0 0
        %953 = vmatprep.subr.bf16.mxu0 0
        %954 = vmatpush1.bf16.msra.mxu0 0
        %955 = vmatprep.subr.bf16.mxu0 0
        %956 = vmatpush1.bf16.msra.mxu0 0
        %957 = vmatprep.mubr.bf16.mxu0 0
        %958 = vmatmul.mubr.bf16.gmra.mrb[0].mxu0 %v919
        %v959 = vpop.f32.mrb[0].mxu0
        %v960 = vadd.f32 0.0, %v959
        %v961 = vpop.f32.mrb[0].mxu0
        %v962 = vpop.f32.mrb[0].mxu0
        %v963 = vpop.f32.mrb[0].mxu0
        %964 = vdwg.mxu0
        %v966 = vsel %vm917, %v631, 0
        %v969 = vsel %vm921, %v632, 0
        %971 = vmatprep.subr.bf16.mxu0 0
        %972 = vmatpush1.bf16.msra.mxu0 %v969
        %973 = vmatprep.subr.bf16.mxu0 0
        %974 = vmatpush1.bf16.msra.mxu0 0
        %975 = vmatprep.subr.bf16.mxu0 0
        %976 = vmatpush1.bf16.msra.mxu0 0
        %977 = vmatprep.subr.bf16.mxu0 0
        %978 = vmatpush1.bf16.msra.mxu0 0
        %979 = vmatprep.subr.bf16.mxu0 0
        %980 = vmatpush1.bf16.msra.mxu0 0
        %981 = vmatprep.subr.bf16.mxu0 0
        %982 = vmatpush1.bf16.msra.mxu0 0
        %983 = vmatprep.subr.bf16.mxu0 0
        %984 = vmatpush1.bf16.msra.mxu0 0
        %985 = vmatprep.subr.bf16.mxu0 0
        %986 = vmatpush1.bf16.msra.mxu0 0
        %987 = vmatprep.subr.bf16.mxu0 0
        %988 = vmatpush1.bf16.msra.mxu0 0
        %989 = vmatprep.subr.bf16.mxu0 0
        %990 = vmatpush1.bf16.msra.mxu0 0
        %991 = vmatprep.subr.bf16.mxu0 0
        %992 = vmatpush1.bf16.msra.mxu0 0
        %993 = vmatprep.subr.bf16.mxu0 0
        %994 = vmatpush1.bf16.msra.mxu0 0
        %995 = vmatprep.subr.bf16.mxu0 0
        %996 = vmatpush1.bf16.msra.mxu0 0
        %997 = vmatprep.subr.bf16.mxu0 0
        %998 = vmatpush1.bf16.msra.mxu0 0
        %999 = vmatprep.subr.bf16.mxu0 0
        %1000 = vmatpush1.bf16.msra.mxu0 0
        %1001 = vmatprep.subr.bf16.mxu0 0
        %1002 = vmatpush1.bf16.msra.mxu0 0
        %1003 = vmatprep.mubr.bf16.mxu0 0
        %1004 = vmatmul.mubr.bf16.gmra.mrb[0].mxu0 %v966
        %v1005 = vpop.f32.mrb[0].mxu0
        %v1006 = vadd.f32 %v960, %v1005
        %v1007 = vpop.f32.mrb[0].mxu0
        %v1008 = vpop.f32.mrb[0].mxu0
        %v1009 = vpop.f32.mrb[0].mxu0
        %1010 = vdwg.mxu0
        %s1011 = scalar_lea.vmem %s2, 32
        %v1012 = vld [vmem:[%s1011] sm:$0xf]
        %v1013 = vld [vmem:[%s1011 + $0x4] sm:$0xf]
        %v1014 = vld [vmem:[%s1011 + $0x8] sm:$0xf]
        %v1015 = vld [vmem:[%s1011 + $0xc] sm:$0xf]
        %v1020 = vunpack.c.l.b16 %v1012
        %v1021 = vunpack.c.l.b16 %v1013
        %v1022 = vunpack.c.l.b16 %v1014
        %v1023 = vunpack.c.l.b16 %v1015
        %v1024 = vpack.c.b16 %v1021, %v1020
        %v1025 = vpack.c.b16 %v1023, %v1022
        %1028 = vmatprep.subr.bf16.mxu0 0
        %1029 = vmatpush1.bf16.msra.mxu0 %v1024
        %1030 = vmatprep.subr.bf16.mxu0 0
        %1031 = vmatpush1.bf16.msra.mxu0 %v1025
        %1032 = vmatprep.subr.bf16.mxu0 0
        %1033 = vmatpush1.bf16.msra.mxu0 0
        %1034 = vmatprep.subr.bf16.mxu0 0
        %1035 = vmatpush1.bf16.msra.mxu0 0
        %1036 = vmatprep.subr.bf16.mxu0 0
        %1037 = vmatpush1.bf16.msra.mxu0 0
        %1038 = vmatprep.subr.bf16.mxu0 0
        %1039 = vmatpush1.bf16.msra.mxu0 0
        %1040 = vmatprep.subr.bf16.mxu0 0
        %1041 = vmatpush1.bf16.msra.mxu0 0
        %1042 = vmatprep.subr.bf16.mxu0 0
        %1043 = vmatpush1.bf16.msra.mxu0 0
        %1044 = vmatprep.subr.bf16.mxu0 0
        %1045 = vmatpush1.bf16.msra.mxu0 0
        %1046 = vmatprep.subr.bf16.mxu0 0
        %1047 = vmatpush1.bf16.msra.mxu0 0
        %1048 = vmatprep.subr.bf16.mxu0 0
        %1049 = vmatpush1.bf16.msra.mxu0 0
        %1050 = vmatprep.subr.bf16.mxu0 0
        %1051 = vmatpush1.bf16.msra.mxu0 0
        %1052 = vmatprep.subr.bf16.mxu0 0
        %1053 = vmatpush1.bf16.msra.mxu0 0
        %1054 = vmatprep.subr.bf16.mxu0 0
        %1055 = vmatpush1.bf16.msra.mxu0 0
        %1056 = vmatprep.subr.bf16.mxu0 0
        %1057 = vmatpush1.bf16.msra.mxu0 0
        %1058 = vmatprep.subr.bf16.mxu0 0
        %1059 = vmatpush1.bf16.msra.mxu0 0
        %1060 = vmatprep.mubr.bf16.mxu0 0
        %1061 = vmatmul.mubr.bf16.gmra.mrb[0].mxu0 %v355
        %v1062 = vpop.f32.mrb[0].mxu0
        %v1063 = vadd.f32 0.0, %v1062
        %v1064 = vpop.f32.mrb[0].mxu0
        %v1065 = vpop.f32.mrb[0].mxu0
        %v1066 = vpop.f32.mrb[0].mxu0
        %1067 = vdwg.mxu0
        %s1068 = scalar_lea.vmem %s3, 24
        %v1069 = vld [vmem:[%s1068] sm:$0xf]
        %v1070 = vld [vmem:[%s1068 + $0x4] sm:$0xf]
        %v1071 = vld [vmem:[%s1068 + $0x8] sm:$0xf]
        %v1075 = vunpack.c.l.b16 %v1069
        %v1076 = vunpack.c.l.b16 %v1070
        %v1077 = vunpack.c.l.b16 %v1071
        %v1078 = vpack.c.b16 %v1076, %v1075
        %v1079 = vpack.c.b16 %v1077, %v1077
        %v1082 = vsel %vm418, %v1079, 0
        %1084 = vmatprep.subr.bf16.mxu0 0
        %1085 = vmatpush1.bf16.msra.mxu0 %v1078
        %1086 = vmatprep.subr.bf16.mxu0 0
        %1087 = vmatpush1.bf16.msra.mxu0 %v1082
        %1088 = vmatprep.subr.bf16.mxu0 0
        %1089 = vmatpush1.bf16.msra.mxu0 0
        %1090 = vmatprep.subr.bf16.mxu0 0
        %1091 = vmatpush1.bf16.msra.mxu0 0
        %1092 = vmatprep.subr.bf16.mxu0 0
        %1093 = vmatpush1.bf16.msra.mxu0 0
        %1094 = vmatprep.subr.bf16.mxu0 0
        %1095 = vmatpush1.bf16.msra.mxu0 0
        %1096 = vmatprep.subr.bf16.mxu0 0
        %1097 = vmatpush1.bf16.msra.mxu0 0
        %1098 = vmatprep.subr.bf16.mxu0 0
        %1099 = vmatpush1.bf16.msra.mxu0 0
        %1100 = vmatprep.subr.bf16.mxu0 0
        %1101 = vmatpush1.bf16.msra.mxu0 0
        %1102 = vmatprep.subr.bf16.mxu0 0
        %1103 = vmatpush1.bf16.msra.mxu0 0
        %1104 = vmatprep.subr.bf16.mxu0 0
        %1105 = vmatpush1.bf16.msra.mxu0 0
        %1106 = vmatprep.subr.bf16.mxu0 0
        %1107 = vmatpush1.bf16.msra.mxu0 0
        %1108 = vmatprep.subr.bf16.mxu0 0
        %1109 = vmatpush1.bf16.msra.mxu0 0
        %1110 = vmatprep.subr.bf16.mxu0 0
        %1111 = vmatpush1.bf16.msra.mxu0 0
        %1112 = vmatprep.subr.bf16.mxu0 0
        %1113 = vmatpush1.bf16.msra.mxu0 0
        %1114 = vmatprep.subr.bf16.mxu0 0
        %1115 = vmatpush1.bf16.msra.mxu0 0
        %1116 = vmatprep.mubr.bf16.mxu0 0
        %1117 = vmatmul.mubr.bf16.gmra.mrb[0].mxu0 %v416
        %v1118 = vpop.f32.mrb[0].mxu0
        %v1119 = vadd.f32 0.0, %v1118
        %v1120 = vpop.f32.mrb[0].mxu0
        %v1121 = vpop.f32.mrb[0].mxu0
        %v1122 = vadd.f32 0.0, %v1121
        %v1123 = vpop.f32.mrb[0].mxu0
        %1124 = vdwg.mxu0
        %s1125 = scalar_lea.vmem %s4, 24
        %v1126 = vld [vmem:[%s1125] sm:$0xf]
        %v1127 = vld [vmem:[%s1125 + $0x4] sm:$0xf]
        %v1128 = vld [vmem:[%s1125 + $0x8] sm:$0xf]
        %v1132 = vunpack.c.l.b16 %v1126
        %v1133 = vunpack.c.l.b16 %v1127
        %v1134 = vunpack.c.l.b16 %v1128
        %v1135 = vpack.c.b16 %v1133, %v1132
        %v1136 = vpack.c.b16 %v1134, %v1134
        %v1139 = vsel %vm418, %v1136, 0
        %1141 = vmatprep.subr.bf16.mxu0 0
        %1142 = vmatpush1.bf16.msra.mxu0 %v1135
        %1143 = vmatprep.subr.bf16.mxu0 0
        %1144 = vmatpush1.bf16.msra.mxu0 %v1139
        %1145 = vmatprep.subr.bf16.mxu0 0
        %1146 = vmatpush1.bf16.msra.mxu0 0
        %1147 = vmatprep.subr.bf16.mxu0 0
        %1148 = vmatpush1.bf16.msra.mxu0 0
        %1149 = vmatprep.subr.bf16.mxu0 0
        %1150 = vmatpush1.bf16.msra.mxu0 0
        %1151 = vmatprep.subr.bf16.mxu0 0
        %1152 = vmatpush1.bf16.msra.mxu0 0
        %1153 = vmatprep.subr.bf16.mxu0 0
        %1154 = vmatpush1.bf16.msra.mxu0 0
        %1155 = vmatprep.subr.bf16.mxu0 0
        %1156 = vmatpush1.bf16.msra.mxu0 0
        %1157 = vmatprep.subr.bf16.mxu0 0
        %1158 = vmatpush1.bf16.msra.mxu0 0
        %1159 = vmatprep.subr.bf16.mxu0 0
        %1160 = vmatpush1.bf16.msra.mxu0 0
        %1161 = vmatprep.subr.bf16.mxu0 0
        %1162 = vmatpush1.bf16.msra.mxu0 0
        %1163 = vmatprep.subr.bf16.mxu0 0
        %1164 = vmatpush1.bf16.msra.mxu0 0
        %1165 = vmatprep.subr.bf16.mxu0 0
        %1166 = vmatpush1.bf16.msra.mxu0 0
        %1167 = vmatprep.subr.bf16.mxu0 0
        %1168 = vmatpush1.bf16.msra.mxu0 0
        %1169 = vmatprep.subr.bf16.mxu0 0
        %1170 = vmatpush1.bf16.msra.mxu0 0
        %1171 = vmatprep.subr.bf16.mxu0 0
        %1172 = vmatpush1.bf16.msra.mxu0 0
        %1173 = vmatprep.mubr.bf16.mxu0 0
        %1174 = vmatmul.mubr.bf16.gmra.mrb[0].mxu0 %v416
        %v1175 = vpop.f32.mrb[0].mxu0
        %v1176 = vadd.f32 0.0, %v1175
        %v1177 = vpop.f32.mrb[0].mxu0
        %v1178 = vpop.f32.mrb[0].mxu0
        %v1179 = vadd.f32 0.0, %v1178
        %v1180 = vpop.f32.mrb[0].mxu0
        %1181 = vdwg.mxu0
        %v1182 = vmul.f32 %v1063, 0.35355338
        %v1183 = vpack.c.bf16 %v1182, %v1182
        %v1184 = vpack.c.bf16 %v1122, %v1119
        %v1186 = vsel %vm522, %v1183, 0
        %v1189 = vsel %vm522, %v1184, 0
        %1191 = vmatprep.subr.bf16.mxu0 0
        %1192 = vmatpush1.bf16.xpose.msra.mxu0 %v1189
        %1193 = vmatprep.subr.bf16.mxu0 0
        %1194 = vmatpush1.bf16.xpose.msra.mxu0 0
        %1195 = vmatprep.subr.bf16.mxu0 0
        %1196 = vmatpush1.bf16.xpose.msra.mxu0 0
        %1197 = vmatprep.subr.bf16.mxu0 0
        %1198 = vmatpush1.bf16.xpose.msra.mxu0 0
        %1199 = vmatprep.subr.bf16.mxu0 0
        %1200 = vmatpush1.bf16.xpose.msra.mxu0 0
        %1201 = vmatprep.subr.bf16.mxu0 0
        %1202 = vmatpush1.bf16.xpose.msra.mxu0 0
        %1203 = vmatprep.subr.bf16.mxu0 0
        %1204 = vmatpush1.bf16.xpose.msra.mxu0 0
        %1205 = vmatprep.subr.bf16.mxu0 0
        %1206 = vmatpush1.bf16.xpose.msra.mxu0 0
        %1207 = vmatprep.subr.bf16.mxu0 0
        %1208 = vmatpush1.bf16.xpose.msra.mxu0 0
        %1209 = vmatprep.subr.bf16.mxu0 0
        %1210 = vmatpush1.bf16.xpose.msra.mxu0 0
        %1211 = vmatprep.subr.bf16.mxu0 0
        %1212 = vmatpush1.bf16.xpose.msra.mxu0 0
        %1213 = vmatprep.subr.bf16.mxu0 0
        %1214 = vmatpush1.bf16.xpose.msra.mxu0 0
        %1215 = vmatprep.subr.bf16.mxu0 0
        %1216 = vmatpush1.bf16.xpose.msra.mxu0 0
        %1217 = vmatprep.subr.bf16.mxu0 0
        %1218 = vmatpush1.bf16.xpose.msra.mxu0 0
        %1219 = vmatprep.subr.bf16.mxu0 0
        %1220 = vmatpush1.bf16.xpose.msra.mxu0 0
        %1221 = vmatprep.subr.bf16.mxu0 0
        %1222 = vmatpush1.bf16.xpose.msra.mxu0 0
        %1223 = vmatprep.mubr.bf16.mxu0 0
        %1224 = vmatmul.mubr.bf16.gmra.mrb[0].mxu0 %v1186
        %v1225 = vpop.f32.mrb[0].mxu0
        %v1226 = vadd.f32 0.0, %v1225
        %v1227 = vpop.f32.mrb[0].mxu0
        %v1228 = vpop.f32.mrb[0].mxu0
        %v1229 = vpop.f32.mrb[0].mxu0
        %1230 = vdwg.mxu0
        %v1231 = vsel %vm569, %v1226, -inf
        %1232 = vmax.xlane.f32.xlu0 %v1231
        %v1233 = vpop.xlane.xlu0 %1232
        %v1234 = vsub.f32 %v1226, %v1233
        %v1235 = vmul.f32 %v1234, 1.442695
        %v1236 = vpow.pop %v1235
        %v1237 = vsel %vm569, %v1236, 0.0
        %1238 = vadd.xlane.f32.xlu0 %v1237
        %v1239 = vpop.xlane.xlu0 %1238
        %v1240 = vrcp.pop %v1239
        %v1241 = vmul.f32 %v1236, %v1240
        %s1242 = scalar_lea.vmem %s322, 16 [#allocation4]
        %1243 = vst.msk [vmem:[%s1242] sm:$0xff] %vm569, %v1241
        %v1244 = vpack.c.bf16 %v1241, %v1241
        %v1245 = vpack.c.bf16 %v1179, %v1176
        %v1247 = vsel %vm569, %v1244, 0
        %v1250 = vsel %vm587, %v1245, 0
        %1252 = vmatprep.subr.bf16.mxu0 0
        %1253 = vmatpush1.bf16.msra.mxu0 %v1250
        %1254 = vmatprep.subr.bf16.mxu0 0
        %1255 = vmatpush1.bf16.msra.mxu0 0
        %1256 = vmatprep.subr.bf16.mxu0 0
        %1257 = vmatpush1.bf16.msra.mxu0 0
        %1258 = vmatprep.subr.bf16.mxu0 0
        %1259 = vmatpush1.bf16.msra.mxu0 0
        %1260 = vmatprep.subr.bf16.mxu0 0
        %1261 = vmatpush1.bf16.msra.mxu0 0
        %1262 = vmatprep.subr.bf16.mxu0 0
        %1263 = vmatpush1.bf16.msra.mxu0 0
        %1264 = vmatprep.subr.bf16.mxu0 0
        %1265 = vmatpush1.bf16.msra.mxu0 0
        %1266 = vmatprep.subr.bf16.mxu0 0
        %1267 = vmatpush1.bf16.msra.mxu0 0
        %1268 = vmatprep.subr.bf16.mxu0 0
        %1269 = vmatpush1.bf16.msra.mxu0 0
        %1270 = vmatprep.subr.bf16.mxu0 0
        %1271 = vmatpush1.bf16.msra.mxu0 0
        %1272 = vmatprep.subr.bf16.mxu0 0
        %1273 = vmatpush1.bf16.msra.mxu0 0
        %1274 = vmatprep.subr.bf16.mxu0 0
        %1275 = vmatpush1.bf16.msra.mxu0 0
        %1276 = vmatprep.subr.bf16.mxu0 0
        %1277 = vmatpush1.bf16.msra.mxu0 0
        %1278 = vmatprep.subr.bf16.mxu0 0
        %1279 = vmatpush1.bf16.msra.mxu0 0
        %1280 = vmatprep.subr.bf16.mxu0 0
        %1281 = vmatpush1.bf16.msra.mxu0 0
        %1282 = vmatprep.subr.bf16.mxu0 0
        %1283 = vmatpush1.bf16.msra.mxu0 0
        %1284 = vmatprep.mubr.bf16.mxu0 0
        %1285 = vmatmul.mubr.bf16.gmra.mrb[0].mxu0 %v1247
        %v1286 = vpop.f32.mrb[0].mxu0
        %v1287 = vadd.f32 0.0, %v1286
        %v1288 = vpop.f32.mrb[0].mxu0
        %v1289 = vpop.f32.mrb[0].mxu0
        %v1290 = vpop.f32.mrb[0].mxu0
        %1291 = vdwg.mxu0
        %v1292 = vpack.c.bf16 %v1287, %v1287
        %s1293 = scalar_lea.vmem %s5, 4
        %v1294 = vld [vmem:[%s1293] sm:$0x3]
        %v1296 = vsel %vm917, %v1292, 0
        %v1299 = vsel %vm921, %v1294, 0
        %1301 = vmatprep.subr.bf16.mxu0 0
        %1302 = vmatpush1.bf16.msra.mxu0 %v1299
        %1303 = vmatprep.subr.bf16.mxu0 0
        %1304 = vmatpush1.bf16.msra.mxu0 0
        %1305 = vmatprep.subr.bf16.mxu0 0
        %1306 = vmatpush1.bf16.msra.mxu0 0
        %1307 = vmatprep.subr.bf16.mxu0 0
        %1308 = vmatpush1.bf16.msra.mxu0 0
        %1309 = vmatprep.subr.bf16.mxu0 0
        %1310 = vmatpush1.bf16.msra.mxu0 0
        %1311 = vmatprep.subr.bf16.mxu0 0
        %1312 = vmatpush1.bf16.msra.mxu0 0
        %1313 = vmatprep.subr.bf16.mxu0 0
        %1314 = vmatpush1.bf16.msra.mxu0 0
        %1315 = vmatprep.subr.bf16.mxu0 0
        %1316 = vmatpush1.bf16.msra.mxu0 0
        %1317 = vmatprep.subr.bf16.mxu0 0
        %1318 = vmatpush1.bf16.msra.mxu0 0
        %1319 = vmatprep.subr.bf16.mxu0 0
        %1320 = vmatpush1.bf16.msra.mxu0 0
        %1321 = vmatprep.subr.bf16.mxu0 0
        %1322 = vmatpush1.bf16.msra.mxu0 0
        %1323 = vmatprep.subr.bf16.mxu0 0
        %1324 = vmatpush1.bf16.msra.mxu0 0
        %1325 = vmatprep.subr.bf16.mxu0 0
        %1326 = vmatpush1.bf16.msra.mxu0 0
        %1327 = vmatprep.subr.bf16.mxu0 0
        %1328 = vmatpush1.bf16.msra.mxu0 0
        %1329 = vmatprep.subr.bf16.mxu0 0
        %1330 = vmatpush1.bf16.msra.mxu0 0
        %1331 = vmatprep.subr.bf16.mxu0 0
        %1332 = vmatpush1.bf16.msra.mxu0 0
        %1333 = vmatprep.mubr.bf16.mxu0 0
        %1334 = vmatmul.mubr.bf16.gmra.mrb[0].mxu0 %v1296
        %v1335 = vpop.f32.mrb[0].mxu0
        %v1336 = vadd.f32 0.0, %v1335
        %v1337 = vpop.f32.mrb[0].mxu0
        %v1338 = vpop.f32.mrb[0].mxu0
        %v1339 = vpop.f32.mrb[0].mxu0
        %1340 = vdwg.mxu0
        %v1341 = vadd.f32 %v1006, %v1336
        %s1342 = scalar_lea.vmem %s2, 48
        %v1343 = vld [vmem:[%s1342] sm:$0xf]
        %v1344 = vld [vmem:[%s1342 + $0x4] sm:$0xf]
        %v1345 = vld [vmem:[%s1342 + $0x8] sm:$0xf]
        %v1346 = vld [vmem:[%s1342 + $0xc] sm:$0xf]
        %v1351 = vunpack.c.l.b16 %v1343
        %v1352 = vunpack.c.l.b16 %v1344
        %v1353 = vunpack.c.l.b16 %v1345
        %v1354 = vunpack.c.l.b16 %v1346
        %v1355 = vpack.c.b16 %v1352, %v1351
        %v1356 = vpack.c.b16 %v1354, %v1353
        %1359 = vmatprep.subr.bf16.mxu0 0
        %1360 = vmatpush1.bf16.msra.mxu0 %v1355
        %1361 = vmatprep.subr.bf16.mxu0 0
        %1362 = vmatpush1.bf16.msra.mxu0 %v1356
        %1363 = vmatprep.subr.bf16.mxu0 0
        %1364 = vmatpush1.bf16.msra.mxu0 0
        %1365 = vmatprep.subr.bf16.mxu0 0
        %1366 = vmatpush1.bf16.msra.mxu0 0
        %1367 = vmatprep.subr.bf16.mxu0 0
        %1368 = vmatpush1.bf16.msra.mxu0 0
        %1369 = vmatprep.subr.bf16.mxu0 0
        %1370 = vmatpush1.bf16.msra.mxu0 0
        %1371 = vmatprep.subr.bf16.mxu0 0
        %1372 = vmatpush1.bf16.msra.mxu0 0
        %1373 = vmatprep.subr.bf16.mxu0 0
        %1374 = vmatpush1.bf16.msra.mxu0 0
        %1375 = vmatprep.subr.bf16.mxu0 0
        %1376 = vmatpush1.bf16.msra.mxu0 0
        %1377 = vmatprep.subr.bf16.mxu0 0
        %1378 = vmatpush1.bf16.msra.mxu0 0
        %1379 = vmatprep.subr.bf16.mxu0 0
        %1380 = vmatpush1.bf16.msra.mxu0 0
        %1381 = vmatprep.subr.bf16.mxu0 0
        %1382 = vmatpush1.bf16.msra.mxu0 0
        %1383 = vmatprep.subr.bf16.mxu0 0
        %1384 = vmatpush1.bf16.msra.mxu0 0
        %1385 = vmatprep.subr.bf16.mxu0 0
        %1386 = vmatpush1.bf16.msra.mxu0 0
        %1387 = vmatprep.subr.bf16.mxu0 0
        %1388 = vmatpush1.bf16.msra.mxu0 0
        %1389 = vmatprep.subr.bf16.mxu0 0
        %1390 = vmatpush1.bf16.msra.mxu0 0
        %1391 = vmatprep.mubr.bf16.mxu0 0
        %1392 = vmatmul.mubr.bf16.gmra.mrb[0].mxu0 %v355
        %v1393 = vpop.f32.mrb[0].mxu0
        %v1394 = vadd.f32 0.0, %v1393
        %v1395 = vpop.f32.mrb[0].mxu0
        %v1396 = vpop.f32.mrb[0].mxu0
        %v1397 = vpop.f32.mrb[0].mxu0
        %1398 = vdwg.mxu0
        %s1399 = scalar_lea.vmem %s3, 36
        %v1400 = vld [vmem:[%s1399] sm:$0xf]
        %v1401 = vld [vmem:[%s1399 + $0x4] sm:$0xf]
        %v1402 = vld [vmem:[%s1399 + $0x8] sm:$0xf]
        %v1406 = vunpack.c.l.b16 %v1400
        %v1407 = vunpack.c.l.b16 %v1401
        %v1408 = vunpack.c.l.b16 %v1402
        %v1409 = vpack.c.b16 %v1407, %v1406
        %v1410 = vpack.c.b16 %v1408, %v1408
        %v1413 = vsel %vm418, %v1410, 0
        %1415 = vmatprep.subr.bf16.mxu0 0
        %1416 = vmatpush1.bf16.msra.mxu0 %v1409
        %1417 = vmatprep.subr.bf16.mxu0 0
        %1418 = vmatpush1.bf16.msra.mxu0 %v1413
        %1419 = vmatprep.subr.bf16.mxu0 0
        %1420 = vmatpush1.bf16.msra.mxu0 0
        %1421 = vmatprep.subr.bf16.mxu0 0
        %1422 = vmatpush1.bf16.msra.mxu0 0
        %1423 = vmatprep.subr.bf16.mxu0 0
        %1424 = vmatpush1.bf16.msra.mxu0 0
        %1425 = vmatprep.subr.bf16.mxu0 0
        %1426 = vmatpush1.bf16.msra.mxu0 0
        %1427 = vmatprep.subr.bf16.mxu0 0
        %1428 = vmatpush1.bf16.msra.mxu0 0
        %1429 = vmatprep.subr.bf16.mxu0 0
        %1430 = vmatpush1.bf16.msra.mxu0 0
        %1431 = vmatprep.subr.bf16.mxu0 0
        %1432 = vmatpush1.bf16.msra.mxu0 0
        %1433 = vmatprep.subr.bf16.mxu0 0
        %1434 = vmatpush1.bf16.msra.mxu0 0
        %1435 = vmatprep.subr.bf16.mxu0 0
        %1436 = vmatpush1.bf16.msra.mxu0 0
        %1437 = vmatprep.subr.bf16.mxu0 0
        %1438 = vmatpush1.bf16.msra.mxu0 0
        %1439 = vmatprep.subr.bf16.mxu0 0
        %1440 = vmatpush1.bf16.msra.mxu0 0
        %1441 = vmatprep.subr.bf16.mxu0 0
        %1442 = vmatpush1.bf16.msra.mxu0 0
        %1443 = vmatprep.subr.bf16.mxu0 0
        %1444 = vmatpush1.bf16.msra.mxu0 0
        %1445 = vmatprep.subr.bf16.mxu0 0
        %1446 = vmatpush1.bf16.msra.mxu0 0
        %1447 = vmatprep.mubr.bf16.mxu0 0
        %1448 = vmatmul.mubr.bf16.gmra.mrb[0].mxu0 %v416
        %v1449 = vpop.f32.mrb[0].mxu0
        %v1450 = vadd.f32 0.0, %v1449
        %v1451 = vpop.f32.mrb[0].mxu0
        %v1452 = vpop.f32.mrb[0].mxu0
        %v1453 = vadd.f32 0.0, %v1452
        %v1454 = vpop.f32.mrb[0].mxu0
        %1455 = vdwg.mxu0
        %s1456 = scalar_lea.vmem %s4, 36
        %v1457 = vld [vmem:[%s1456] sm:$0xf]
        %v1458 = vld [vmem:[%s1456 + $0x4] sm:$0xf]
        %v1459 = vld [vmem:[%s1456 + $0x8] sm:$0xf]
        %v1463 = vunpack.c.l.b16 %v1457
        %v1464 = vunpack.c.l.b16 %v1458
        %v1465 = vunpack.c.l.b16 %v1459
        %v1466 = vpack.c.b16 %v1464, %v1463
        %v1467 = vpack.c.b16 %v1465, %v1465
        %v1470 = vsel %vm418, %v1467, 0
        %1472 = vmatprep.subr.bf16.mxu0 0
        %1473 = vmatpush1.bf16.msra.mxu0 %v1466
        %1474 = vmatprep.subr.bf16.mxu0 0
        %1475 = vmatpush1.bf16.msra.mxu0 %v1470
        %1476 = vmatprep.subr.bf16.mxu0 0
        %1477 = vmatpush1.bf16.msra.mxu0 0
        %1478 = vmatprep.subr.bf16.mxu0 0
        %1479 = vmatpush1.bf16.msra.mxu0 0
        %1480 = vmatprep.subr.bf16.mxu0 0
        %1481 = vmatpush1.bf16.msra.mxu0 0
        %1482 = vmatprep.subr.bf16.mxu0 0
        %1483 = vmatpush1.bf16.msra.mxu0 0
        %1484 = vmatprep.subr.bf16.mxu0 0
        %1485 = vmatpush1.bf16.msra.mxu0 0
        %1486 = vmatprep.subr.bf16.mxu0 0
        %1487 = vmatpush1.bf16.msra.mxu0 0
        %1488 = vmatprep.subr.bf16.mxu0 0
        %1489 = vmatpush1.bf16.msra.mxu0 0
        %1490 = vmatprep.subr.bf16.mxu0 0
        %1491 = vmatpush1.bf16.msra.mxu0 0
        %1492 = vmatprep.subr.bf16.mxu0 0
        %1493 = vmatpush1.bf16.msra.mxu0 0
        %1494 = vmatprep.subr.bf16.mxu0 0
        %1495 = vmatpush1.bf16.msra.mxu0 0
        %1496 = vmatprep.subr.bf16.mxu0 0
        %1497 = vmatpush1.bf16.msra.mxu0 0
        %1498 = vmatprep.subr.bf16.mxu0 0
        %1499 = vmatpush1.bf16.msra.mxu0 0
        %1500 = vmatprep.subr.bf16.mxu0 0
        %1501 = vmatpush1.bf16.msra.mxu0 0
        %1502 = vmatprep.subr.bf16.mxu0 0
        %1503 = vmatpush1.bf16.msra.mxu0 0
        %1504 = vmatprep.mubr.bf16.mxu0 0
        %1505 = vmatmul.mubr.bf16.gmra.mrb[0].mxu0 %v416
        %v1506 = vpop.f32.mrb[0].mxu0
        %v1507 = vadd.f32 0.0, %v1506
        %v1508 = vpop.f32.mrb[0].mxu0
        %v1509 = vpop.f32.mrb[0].mxu0
        %v1510 = vadd.f32 0.0, %v1509
        %v1511 = vpop.f32.mrb[0].mxu0
        %1512 = vdwg.mxu0
        %v1513 = vmul.f32 %v1394, 0.35355338
        %v1514 = vpack.c.bf16 %v1513, %v1513
        %v1515 = vpack.c.bf16 %v1453, %v1450
        %v1517 = vsel %vm522, %v1514, 0
        %v1520 = vsel %vm522, %v1515, 0
        %1522 = vmatprep.subr.bf16.mxu0 0
        %1523 = vmatpush1.bf16.xpose.msra.mxu0 %v1520
        %1524 = vmatprep.subr.bf16.mxu0 0
        %1525 = vmatpush1.bf16.xpose.msra.mxu0 0
        %1526 = vmatprep.subr.bf16.mxu0 0
        %1527 = vmatpush1.bf16.xpose.msra.mxu0 0
        %1528 = vmatprep.subr.bf16.mxu0 0
        %1529 = vmatpush1.bf16.xpose.msra.mxu0 0
        %1530 = vmatprep.subr.bf16.mxu0 0
        %1531 = vmatpush1.bf16.xpose.msra.mxu0 0
        %1532 = vmatprep.subr.bf16.mxu0 0
        %1533 = vmatpush1.bf16.xpose.msra.mxu0 0
        %1534 = vmatprep.subr.bf16.mxu0 0
        %1535 = vmatpush1.bf16.xpose.msra.mxu0 0
        %1536 = vmatprep.subr.bf16.mxu0 0
        %1537 = vmatpush1.bf16.xpose.msra.mxu0 0
        %1538 = vmatprep.subr.bf16.mxu0 0
        %1539 = vmatpush1.bf16.xpose.msra.mxu0 0
        %1540 = vmatprep.subr.bf16.mxu0 0
        %1541 = vmatpush1.bf16.xpose.msra.mxu0 0
        %1542 = vmatprep.subr.bf16.mxu0 0
        %1543 = vmatpush1.bf16.xpose.msra.mxu0 0
        %1544 = vmatprep.subr.bf16.mxu0 0
        %1545 = vmatpush1.bf16.xpose.msra.mxu0 0
        %1546 = vmatprep.subr.bf16.mxu0 0
        %1547 = vmatpush1.bf16.xpose.msra.mxu0 0
        %1548 = vmatprep.subr.bf16.mxu0 0
        %1549 = vmatpush1.bf16.xpose.msra.mxu0 0
        %1550 = vmatprep.subr.bf16.mxu0 0
        %1551 = vmatpush1.bf16.xpose.msra.mxu0 0
        %1552 = vmatprep.subr.bf16.mxu0 0
        %1553 = vmatpush1.bf16.xpose.msra.mxu0 0
        %1554 = vmatprep.mubr.bf16.mxu0 0
        %1555 = vmatmul.mubr.bf16.gmra.mrb[0].mxu0 %v1517
        %v1556 = vpop.f32.mrb[0].mxu0
        %v1557 = vadd.f32 0.0, %v1556
        %v1558 = vpop.f32.mrb[0].mxu0
        %v1559 = vpop.f32.mrb[0].mxu0
        %v1560 = vpop.f32.mrb[0].mxu0
        %1561 = vdwg.mxu0
        %v1562 = vsel %vm569, %v1557, -inf
        %1563 = vmax.xlane.f32.xlu0 %v1562
        %v1564 = vpop.xlane.xlu0 %1563
        %v1565 = vsub.f32 %v1557, %v1564
        %v1566 = vmul.f32 %v1565, 1.442695
        %v1567 = vpow.pop %v1566
        %v1568 = vsel %vm569, %v1567, 0.0
        %1569 = vadd.xlane.f32.xlu0 %v1568
        %v1570 = vpop.xlane.xlu0 %1569
        %v1571 = vrcp.pop %v1570
        %v1572 = vmul.f32 %v1567, %v1571
        %s1573 = scalar_lea.vmem %s322, 24 [#allocation4]
        %1574 = vst.msk [vmem:[%s1573] sm:$0xff] %vm569, %v1572
        %v1575 = vpack.c.bf16 %v1572, %v1572
        %v1576 = vpack.c.bf16 %v1510, %v1507
        %v1578 = vsel %vm569, %v1575, 0
        %v1581 = vsel %vm587, %v1576, 0
        %1583 = vmatprep.subr.bf16.mxu0 0
        %1584 = vmatpush1.bf16.msra.mxu0 %v1581
        %1585 = vmatprep.subr.bf16.mxu0 0
        %1586 = vmatpush1.bf16.msra.mxu0 0
        %1587 = vmatprep.subr.bf16.mxu0 0
        %1588 = vmatpush1.bf16.msra.mxu0 0
        %1589 = vmatprep.subr.bf16.mxu0 0
        %1590 = vmatpush1.bf16.msra.mxu0 0
        %1591 = vmatprep.subr.bf16.mxu0 0
        %1592 = vmatpush1.bf16.msra.mxu0 0
        %1593 = vmatprep.subr.bf16.mxu0 0
        %1594 = vmatpush1.bf16.msra.mxu0 0
        %1595 = vmatprep.subr.bf16.mxu0 0
        %1596 = vmatpush1.bf16.msra.mxu0 0
        %1597 = vmatprep.subr.bf16.mxu0 0
        %1598 = vmatpush1.bf16.msra.mxu0 0
        %1599 = vmatprep.subr.bf16.mxu0 0
        %1600 = vmatpush1.bf16.msra.mxu0 0
        %1601 = vmatprep.subr.bf16.mxu0 0
        %1602 = vmatpush1.bf16.msra.mxu0 0
        %1603 = vmatprep.subr.bf16.mxu0 0
        %1604 = vmatpush1.bf16.msra.mxu0 0
        %1605 = vmatprep.subr.bf16.mxu0 0
        %1606 = vmatpush1.bf16.msra.mxu0 0
        %1607 = vmatprep.subr.bf16.mxu0 0
        %1608 = vmatpush1.bf16.msra.mxu0 0
        %1609 = vmatprep.subr.bf16.mxu0 0
        %1610 = vmatpush1.bf16.msra.mxu0 0
        %1611 = vmatprep.subr.bf16.mxu0 0
        %1612 = vmatpush1.bf16.msra.mxu0 0
        %1613 = vmatprep.subr.bf16.mxu0 0
        %1614 = vmatpush1.bf16.msra.mxu0 0
        %1615 = vmatprep.mubr.bf16.mxu0 0
        %1616 = vmatmul.mubr.bf16.gmra.mrb[0].mxu0 %v1578
        %v1617 = vpop.f32.mrb[0].mxu0
        %v1618 = vadd.f32 0.0, %v1617
        %v1619 = vpop.f32.mrb[0].mxu0
        %v1620 = vpop.f32.mrb[0].mxu0
        %v1621 = vpop.f32.mrb[0].mxu0
        %1622 = vdwg.mxu0
        %v1623 = vpack.c.bf16 %v1618, %v1618
        %s1624 = scalar_lea.vmem %s5, 6
        %v1625 = vld [vmem:[%s1624] sm:$0x3]
        %v1627 = vsel %vm917, %v1623, 0
        %v1630 = vsel %vm921, %v1625, 0
        %1632 = vmatprep.subr.bf16.mxu0 0
        %1633 = vmatpush1.bf16.msra.mxu0 %v1630
        %1634 = vmatprep.subr.bf16.mxu0 0
        %1635 = vmatpush1.bf16.msra.mxu0 0
        %1636 = vmatprep.subr.bf16.mxu0 0
        %1637 = vmatpush1.bf16.msra.mxu0 0
        %1638 = vmatprep.subr.bf16.mxu0 0
        %1639 = vmatpush1.bf16.msra.mxu0 0
        %1640 = vmatprep.subr.bf16.mxu0 0
        %1641 = vmatpush1.bf16.msra.mxu0 0
        %1642 = vmatprep.subr.bf16.mxu0 0
        %1643 = vmatpush1.bf16.msra.mxu0 0
        %1644 = vmatprep.subr.bf16.mxu0 0
        %1645 = vmatpush1.bf16.msra.mxu0 0
        %1646 = vmatprep.subr.bf16.mxu0 0
        %1647 = vmatpush1.bf16.msra.mxu0 0
        %1648 = vmatprep.subr.bf16.mxu0 0
        %1649 = vmatpush1.bf16.msra.mxu0 0
        %1650 = vmatprep.subr.bf16.mxu0 0
        %1651 = vmatpush1.bf16.msra.mxu0 0
        %1652 = vmatprep.subr.bf16.mxu0 0
        %1653 = vmatpush1.bf16.msra.mxu0 0
        %1654 = vmatprep.subr.bf16.mxu0 0
        %1655 = vmatpush1.bf16.msra.mxu0 0
        %1656 = vmatprep.subr.bf16.mxu0 0
        %1657 = vmatpush1.bf16.msra.mxu0 0
        %1658 = vmatprep.subr.bf16.mxu0 0
        %1659 = vmatpush1.bf16.msra.mxu0 0
        %1660 = vmatprep.subr.bf16.mxu0 0
        %1661 = vmatpush1.bf16.msra.mxu0 0
        %1662 = vmatprep.subr.bf16.mxu0 0
        %1663 = vmatpush1.bf16.msra.mxu0 0
        %1664 = vmatprep.mubr.bf16.mxu0 0
        %1665 = vmatmul.mubr.bf16.gmra.mrb[0].mxu0 %v1627
        %v1666 = vpop.f32.mrb[0].mxu0
        %v1667 = vadd.f32 0.0, %v1666
        %v1668 = vpop.f32.mrb[0].mxu0
        %v1669 = vpop.f32.mrb[0].mxu0
        %v1670 = vpop.f32.mrb[0].mxu0
        %1671 = vdwg.mxu0
        %v1672 = vadd.f32 %v1341, %v1667
        %v1673 = vld [vmem:[%s6] sm:$0x1]
        %v1675 = vlaneseq
        %v1676 = vshrl.u32 %v1675, 7
        %v1677 = vsub.s32 0, %v1676
        %v1678 = vrot.slane %v1673, %v1677
        %v1680 = vadd.f32 %v1672, %v1678
        %1681 = vst.msk [vmem:[%s315] sm:$0xff] %vm353, %v1680
        %s1682 = sand.u32 %s191, 1
        %s1683 = scalar_lea.sflag [#allocation3], %s1682
        %s1684 = sand.u32 %s191, 1
        %s1685 = smul.addr %s1684, 8
        %s1686 = scalar_lea.vmem [#allocation2], %s1685
        %s1687 = sand.u32 %s217, 1
        %s1688 = scalar_lea.sflag [#allocation5], %s1687
        %s1689 = sand.u32 %s217, 1
        %s1690 = smul.addr %s1689, 32
        %s1691 = scalar_lea.vmem [#allocation4], %s1690
        // Predicated region
        $region49: #{multi_head_attention.1} parent=47 // pred_check
          %p1692 = pneg %p201
        $region50: #{multi_head_attention.1} parent=47 // pred_check_branch
          %1694 = sbr.rel (%p1692) target = $region52
        $region51: #{multi_head_attention.1} parent=47 // pred_region
          %s1696 = ssub.s32 128, 128
          %1697 = vsyncadd %s1683, %s1696
          %s1698 = smul.addr %s26, 128
          %s1699 = scalar_lea.hbm %s7, %s1698
          %s1701 = sshll.u32 %s1686, 4
          %s1702 = int_to_ptr.vmem [resolvable:$true] %s1701
          %1704 = dma.vmem_to_hbm [thread:$0]  %s1702, 128, %s1699, %s1683
        $region52: #{multi_head_attention.1} parent=47 // pred_fallthru
          _
        // Predicated region
        $region53: #{multi_head_attention.1} parent=47 // pred_check
          %p1705 = pneg %p227
        $region54: #{multi_head_attention.1} parent=47 // pred_check_branch
          %1707 = sbr.rel (%p1705) target = $region56
        $region55: #{multi_head_attention.1} parent=47 // pred_region
          %s1708 = smul.u32 4, %s26
          %s1710 = ssub.s32 512, 512
          %1711 = vsyncadd %s1688, %s1710
          %s1712 = smul.addr %s1708, 128
          %s1713 = scalar_lea.hbm %s8, %s1712
          %s1714 = sshll.u32 %s1691, 4
          %s1715 = int_to_ptr.vmem [resolvable:$true] %s1714
          %1720 = dma.vmem_to_hbm [thread:$0]  %s1715, 512, %s1713, %s1688, 128, 128, 8
        $region56: #{multi_head_attention.1} parent=47 // pred_fallthru
          _
      $region48: #{multi_head_attention.1} parent=5 // pred_fallthru
        _
      %p1721 = scmp.le.s32.totalorder 2, %s21
      // Predicated region
      $region57: #{multi_head_attention.1} parent=5 // pred_check
        %p1722 = pneg %p1721
      $region58: #{multi_head_attention.1} parent=5 // pred_check_branch
        %1724 = sbr.rel (%p1722) target = $region60
      $region59: #{multi_head_attention.1} parent=5 // pred_region
        %s1725 = ssub.s32 %s21, 2
        // Predicated region
        $region61: #{multi_head_attention.1} parent=59 // pred_check
          %p1726 = pneg %p207
        $region62: #{multi_head_attention.1} parent=59 // pred_check_branch
          %1728 = sbr.rel (%p1726) target = $region64
        $region63: #{multi_head_attention.1} parent=59 // pred_region
          %s1729 = sand.u32 %s192, 1
          %s1730 = scalar_lea.sflag [#allocation3], %s1729
          %s1731 = sand.u32 %s192, 1
          %s1732 = smul.addr %s1731, 8
          %s1733 = scalar_lea.vmem [#allocation2], %s1732
          %1734 = dma.done %s1730, 128
        $region64: #{multi_head_attention.1} parent=59 // pred_fallthru
          _
        // Predicated region
        $region65: #{multi_head_attention.1} parent=59 // pred_check
          %p1735 = pneg %p233
        $region66: #{multi_head_attention.1} parent=59 // pred_check_branch
          %1737 = sbr.rel (%p1735) target = $region68
        $region67: #{multi_head_attention.1} parent=59 // pred_region
          %s1738 = sand.u32 %s218, 1
          %s1739 = scalar_lea.sflag [#allocation5], %s1738
          %s1740 = sand.u32 %s218, 1
          %s1741 = smul.addr %s1740, 32
          %s1742 = scalar_lea.vmem [#allocation4], %s1741
          %1743 = dma.done %s1739, 512
        $region68: #{multi_head_attention.1} parent=59 // pred_fallthru
          _
      $region60: #{multi_head_attention.1} parent=5 // pred_fallthru
        _
    $region6: #{multi_head_attention.1} parent=1 // loop_footer
      %s25 = sadd.s32 1, %s21
    $region7: #{multi_head_attention.1} parent=1 // loop_footer_branch
      %20 = sbr.rel target = $region3
    $region8: #{multi_head_attention.1} parent=1 // loop_exit
      _
    %1744 = vsyncpa [#allocation3], 1
    %s1745 = scalar_lea.sflag [#allocation3], 1
    %1746 = vsyncpa %s1745, 1
    %1747 = vsyncpa [#allocation5], 1
    %s1748 = scalar_lea.sflag [#allocation5], 1
    %1749 = vsyncpa %s1748, 1

</llo_original>
